<compile_context>
chip_gen: v6e
topology: v6e:2x2x1
jax: 0.10.0
libtpu: 0.0.40
codegen_flags: <defaults>
</compile_context>

<pallas_src>
import jax
import jax.numpy as jnp
from jax.experimental import pallas as pl
from jax.experimental.pallas import tpu as pltpu


# ---------------------------------------------------------------------------
# PackedTensor stand-in (the thing DDP.forward unwraps)
# ---------------------------------------------------------------------------
class PackedTensor:
    def __init__(self, tensor):
        self.tensor = tensor


def _round_up(v, m):
    return (v + m - 1) // m * m


# ---------------------------------------------------------------------------
# Pallas kernel: fused  o = relu(x @ W1 + b1) @ W2 + b2
#   x_ref:  (TB, D_in)   f32  (cast to bf16 in-kernel, on the VPU)
#   w1_ref: (D_in, D_h)  bf16 (VMEM-resident, single-buffered)
#   b1_ref: (1, D_h)     f32
#   w2_ref: (D_h, D_out) bf16 (VMEM-resident, single-buffered)
#   b2_ref: (1, D_out)   f32
#   o_ref:  (TB, D_out)  out_dtype
# ---------------------------------------------------------------------------
def _mlp_kernel(x_ref, w1_ref, b1_ref, w2_ref, b2_ref, o_ref):
    # In-kernel f32 -> bf16 cast (VPU, hides under MXU); avoids a separate
    # wrapper-side convert and an extra HBM round trip of x.
    x = x_ref[...].astype(jnp.bfloat16)
    # First matmul on the MXU: bf16 x bf16 -> f32 accumulate.
    h = jnp.dot(x, w1_ref[...], preferred_element_type=jnp.float32)
    # Bias + ReLU in f32 on the VPU (v5e has no bf16 VPU).
    h = jnp.maximum(h + b1_ref[...], 0.0)
    # Second matmul: cast the activation back to bf16 to keep the MXU in
    # bf16 mode; accumulate in f32.
    o = jnp.dot(h.astype(jnp.bfloat16), w2_ref[...],
                preferred_element_type=jnp.float32)
    o_ref[...] = (o + b2_ref[...]).astype(o_ref.dtype)


def _derive_batch_tile(B, D_in, D_h, D_out, out_itemsize):
    """Pick the batch tile from VMEM headroom (generation-aware) and grid-step
    amortization, instead of a hardcoded 256."""
    try:
        info = pltpu.get_tpu_info()
        vmem_bytes = int(getattr(info, "vmem_capacity_bytes", 64 << 20))
    except Exception:  # pragma: no cover - conservative fallback
        vmem_bytes = 64 << 20  # v7x per-TC VMEM, the smallest of v5e/v6e/v7x
    # Stay well inside the 32 MiB default scoped limit and half of physical
    # VMEM (double-buffer + compiler scratch headroom).
    budget = min(vmem_bytes // 2, 24 << 20)

    # Fixed (grid-invariant) VMEM: single-buffered bf16 weights + f32 biases.
    fixed = 2 * (D_in * D_h + D_h * D_out) + 4 * (D_h + D_out)
    # Per-batch-row VMEM: x f32 double-buffered + out double-buffered
    #                     + f32 intermediate h + bf16 casts of x and h.
    per_row = (2 * 4 * D_in + 2 * out_itemsize * D_out
               + 4 * D_h + 2 * D_in + 2 * D_h)
    avail = max(budget - fixed, per_row * 8)
    tb_vmem = avail // per_row

    # Amortize ~0.35us/step overhead but keep >= ~6 grid steps for large B
    # (>= 2-3 steps per TensorCore on v7x so DMAs stay hidden).
    tb_target = max(B // 6, 512)
    tb = min(2048, tb_vmem, tb_target, _round_up(B, 8))
    # MXU-friendly granularity: multiple of 128 rows when possible, else 8.
    if tb >= 128:
        tb = (tb // 128) * 128
    else:
        tb = max(8, (tb // 8) * 8)
    return int(tb)


def mlp_forward(x, w1, b1, w2, b2, *, out_dtype=None):
    B, D_in = x.shape
    D_h = w1.shape[1]
    D_out = w2.shape[1]
    out_dtype = x.dtype if out_dtype is None else out_dtype
    out_itemsize = jnp.dtype(out_dtype).itemsize

    # No-op if MLPNet.__init__ already prepared dtypes (the common path).
    x_f = jnp.asarray(x, jnp.float32)
    w1_bf = jnp.asarray(w1, jnp.bfloat16)
    w2_bf = jnp.asarray(w2, jnp.bfloat16)
    b1_f = jnp.asarray(b1, jnp.float32).reshape(1, D_h)
    b2_f = jnp.asarray(b2, jnp.float32).reshape(1, D_out)

    tb = _derive_batch_tile(B, D_in, D_h, D_out, out_itemsize)
    # Ragged last block (B % tb != 0) is handled by Pallas: OOB input rows are
    # garbage, the corresponding OOB output rows are discarded. Batch rows are
    # independent, so this is exact for the first B rows.
    grid = (pl.cdiv(B, tb),)

    flops = 2 * B * D_in * D_h + 2 * B * D_h * D_out
    bytes_accessed = (x_f.size * 4 + w1_bf.size * 2 + w2_bf.size * 2
                      + b1_f.size * 4 + b2_f.size * 4
                      + B * D_out * out_itemsize)

    return pl.pallas_call(
        _mlp_kernel,
        out_shape=jax.ShapeDtypeStruct((B, D_out), out_dtype),
        grid=grid,
        in_specs=[
            # Activations: tiled over the batch axis (double-buffered DMA).
            pl.BlockSpec((tb, D_in), lambda i: (i, 0)),
            # Weights / biases: constant index_map -> fetched once, resident,
            # single-buffered to halve their VMEM footprint (v7x: 64 MiB).
            pl.BlockSpec((D_in, D_h), lambda i: (0, 0),
                         pipeline_mode=pl.Buffered(1)),
            pl.BlockSpec((1, D_h), lambda i: (0, 0),
                         pipeline_mode=pl.Buffered(1)),
            pl.BlockSpec((D_h, D_out), lambda i: (0, 0),
                         pipeline_mode=pl.Buffered(1)),
            pl.BlockSpec((1, D_out), lambda i: (0, 0),
                         pipeline_mode=pl.Buffered(1)),
        ],
        out_specs=pl.BlockSpec((tb, D_out), lambda i: (i, 0)),
        compiler_params=pltpu.CompilerParams(
            dimension_semantics=("parallel",)),
        cost_estimate=pl.CostEstimate(
            flops=flops, transcendentals=0, bytes_accessed=bytes_accessed),
    )(x_f, w1_bf, b1_f, w2_bf, b2_f)


# ---------------------------------------------------------------------------
# Synthetic `net` (the thing DDP wraps) and the DDP wrapper itself
# ---------------------------------------------------------------------------
class MLPNet:
    def __init__(self, w1, b1, w2, b2):
        D_in, D_h = w1.shape
        D_out = w2.shape[1]
        b1 = jnp.asarray(b1, jnp.float32).reshape(1, D_h)
        b2 = jnp.asarray(b2, jnp.float32).reshape(1, D_out)
        # One-time pad of the *internal* hidden dim to a 256-multiple so both
        # MXU matmuls stay on the unmasked fast path.  Exact: padded W1
        # columns / b1 entries are zero -> relu(0)=0, and those rows of W2
        # are zero, so they contribute nothing.
        d_h_pad = _round_up(D_h, 256)
        if d_h_pad != D_h:
            w1 = jnp.pad(jnp.asarray(w1), ((0, 0), (0, d_h_pad - D_h)))
            b1 = jnp.pad(b1, ((0, 0), (0, d_h_pad - D_h)))
            w2 = jnp.pad(jnp.asarray(w2), ((0, d_h_pad - D_h), (0, 0)))
        # TODO(synk): D_in / D_out padding would need a per-call x pad /
        # output slice (extra HBM copies), so keep those 128/256-multiples
        # in the real model instead of padding here.
        # bf16 weights stored ONCE (no per-forward convert / HBM round trip).
        self.w1 = jnp.asarray(w1, jnp.bfloat16)
        self.b1 = b1
        self.w2 = jnp.asarray(w2, jnp.bfloat16)
        self.b2 = b2

    def __call__(self, x):
        return mlp_forward(x, self.w1, self.b1, self.w2, self.b2)


class DDP:
    """Faithful port of the PyTorch DDP.forward: unwrap PackedTensor args,
    then delegate to self.net."""
    # TODO(synk): gradient-bucket all-reduce (make_async_remote_copy ring) is
    # not implemented; the reference module's forward has no collective either.

    def __init__(self, net):
        self.net = net

    def __call__(self, *args):
        inputs = []
        for arg in args:
            if isinstance(arg, PackedTensor):
                inputs.append(arg.tensor)
            else:
                inputs.append(arg)
        return self.net(*inputs)

    # alias to match nn.Module.forward naming
    forward = __call__


# ---------------------------------------------------------------------------
if __name__ == "__main__":
    key = jax.random.PRNGKey(0)
    k_x, k_w1, k_b1, k_w2, k_b2 = jax.random.split(key, 5)

    # Lane-dense dims (256-multiples feed the v6e/v7x 2x256x256 MXU).
    # B=2048 -> derived tile of 512 rows and a 4-step parallel grid
    # (>=2 steps per TensorCore on v7x, DMAs hidden under MXU work).
    B, D_in, D_h, D_out = 2048, 256, 256, 256

    x = jax.random.normal(k_x, (B, D_in), dtype=jnp.float32)
    w1 = jax.random.normal(k_w1, (D_in, D_h), dtype=jnp.float32) * 0.05
    b1 = jax.random.normal(k_b1, (1, D_h), dtype=jnp.float32) * 0.05
    w2 = jax.random.normal(k_w2, (D_h, D_out), dtype=jnp.float32) * 0.05
    b2 = jax.random.normal(k_b2, (1, D_out), dtype=jnp.float32) * 0.05

    net = MLPNet(w1, b1, w2, b2)
    ddp = DDP(net)

    # Pass one PackedTensor arg (gets unwrapped) — same semantics as the
    # PyTorch forward.
    out = ddp(PackedTensor(x))
    out = jax.block_until_ready(out)

    # Reference check in plain JAX, matching the kernel's precision recipe
    # (in-kernel bf16 cast of x, bf16 weights, f32 accumulation, f32 bias).
    xb = x.astype(jnp.bfloat16)
    h_ref = jnp.maximum(
        jnp.dot(xb, net.w1, preferred_element_type=jnp.float32) + net.b1, 0.0)
    ref = jnp.dot(h_ref.astype(jnp.bfloat16), net.w2,
                  preferred_element_type=jnp.float32) + net.b2

    assert out.shape == (B, D_out)
    assert out.dtype == x.dtype
    assert jnp.allclose(out, ref, atol=5e-3, rtol=5e-3)

    print("KERNEL_OK")
</pallas_src>

<mosaic_0001>
module attributes {stable_mosaic.version = 11 : i64} {
  func.func @_mlp_kernel(%arg0: i32, %arg1: memref<512x256xf32, #tpu.memory_space<vmem>>, %arg2: memref<256x256xbf16, #tpu.memory_space<vmem>>, %arg3: memref<1x256xf32, #tpu.memory_space<vmem>>, %arg4: memref<256x256xbf16, #tpu.memory_space<vmem>>, %arg5: memref<1x256xf32, #tpu.memory_space<vmem>>, %arg6: memref<512x256xf32, #tpu.memory_space<vmem>>) attributes {dimension_semantics = [#tpu.dimension_semantics<parallel>], iteration_bounds = array<i64: 4>, scalar_prefetch = 0 : i64, scratch_operands = 0 : i64, tpu.core_type = #tpu.core_type<tc>, window_params = [{transform_indices = @transform_0, window_bounds = array<i64: 512, 256>}, {pipeline_mode = #tpu.pipeline_mode<synchronous>, transform_indices = @transform_1, window_bounds = array<i64: 256, 256>}, {pipeline_mode = #tpu.pipeline_mode<synchronous>, transform_indices = @transform_2, window_bounds = array<i64: 1, 256>}, {pipeline_mode = #tpu.pipeline_mode<synchronous>, transform_indices = @transform_3, window_bounds = array<i64: 256, 256>}, {pipeline_mode = #tpu.pipeline_mode<synchronous>, transform_indices = @transform_4, window_bounds = array<i64: 1, 256>}, {transform_indices = @transform_5, window_bounds = array<i64: 512, 256>}]} {
    %c0 = arith.constant 0 : index
    %c0_0 = arith.constant 0 : index
    %0 = vector.load %arg1[%c0, %c0_0] : memref<512x256xf32, #tpu.memory_space<vmem>>, vector<512x256xf32>
    %1 = arith.truncf %0 : vector<512x256xf32> to vector<512x256xbf16>
    %c0_1 = arith.constant 0 : index
    %c0_2 = arith.constant 0 : index
    %2 = vector.load %arg2[%c0_1, %c0_2] : memref<256x256xbf16, #tpu.memory_space<vmem>>, vector<256x256xbf16>
    %cst = arith.constant dense<0.000000e+00> : vector<512x256xf32>
    %3 = tpu.matmul %1, %2, %cst {dimension_numbers = #tpu.dot_dimension_numbers<[1], [0], [0], [1], [0, 0, 1, 1], [], []>} : vector<512x256xbf16>, vector<256x256xbf16>, vector<512x256xf32> -> vector<512x256xf32>
    %c0_3 = arith.constant 0 : index
    %c0_4 = arith.constant 0 : index
    %4 = vector.load %arg3[%c0_3, %c0_4] : memref<1x256xf32, #tpu.memory_space<vmem>>, vector<1x256xf32>
    %5 = vector.broadcast %4 : vector<1x256xf32> to vector<512x256xf32>
    %6 = arith.addf %3, %5 : vector<512x256xf32>
    %cst_5 = arith.constant 0.000000e+00 : f32
    %7 = vector.broadcast %cst_5 : f32 to vector<512x256xf32>
    %8 = arith.maximumf %6, %7 : vector<512x256xf32>
    %9 = arith.truncf %8 : vector<512x256xf32> to vector<512x256xbf16>
    %c0_6 = arith.constant 0 : index
    %c0_7 = arith.constant 0 : index
    %10 = vector.load %arg4[%c0_6, %c0_7] : memref<256x256xbf16, #tpu.memory_space<vmem>>, vector<256x256xbf16>
    %cst_8 = arith.constant dense<0.000000e+00> : vector<512x256xf32>
    %11 = tpu.matmul %9, %10, %cst_8 {dimension_numbers = #tpu.dot_dimension_numbers<[1], [0], [0], [1], [0, 0, 1, 1], [], []>} : vector<512x256xbf16>, vector<256x256xbf16>, vector<512x256xf32> -> vector<512x256xf32>
    %c0_9 = arith.constant 0 : index
    %c0_10 = arith.constant 0 : index
    %12 = vector.load %arg5[%c0_9, %c0_10] : memref<1x256xf32, #tpu.memory_space<vmem>>, vector<1x256xf32>
    %13 = vector.broadcast %12 : vector<1x256xf32> to vector<512x256xf32>
    %14 = arith.addf %11, %13 : vector<512x256xf32>
    %c0_11 = arith.constant 0 : index
    %c0_12 = arith.constant 0 : index
    %15 = vector.load %arg6[%c0_11, %c0_12] : memref<512x256xf32, #tpu.memory_space<vmem>>, vector<512x256xf32>
    tpu.vector_store %arg6[%c0_11, %c0_12], %14 {strides = array<i32>} : memref<512x256xf32, #tpu.memory_space<vmem>>, vector<512x256xf32>,
    return
  }
  func.func @transform_0(%arg0: i32) -> (i32, i32) {
    %c0_i32 = arith.constant 0 : i32
    %c0_i32_0 = arith.constant 0 : i32
    return %arg0, %c0_i32 : i32, i32
  }
  func.func @transform_1(%arg0: i32) -> (i32, i32) {
    %c0_i32 = arith.constant 0 : i32
    %c0_i32_0 = arith.constant 0 : i32
    %c0_i32_1 = arith.constant 0 : i32
    return %c0_i32, %c0_i32_0 : i32, i32
  }
  func.func @transform_2(%arg0: i32) -> (i32, i32) {
    %c0_i32 = arith.constant 0 : i32
    %c0_i32_0 = arith.constant 0 : i32
    %c0_i32_1 = arith.constant 0 : i32
    return %c0_i32, %c0_i32_0 : i32, i32
  }
  func.func @transform_3(%arg0: i32) -> (i32, i32) {
    %c0_i32 = arith.constant 0 : i32
    %c0_i32_0 = arith.constant 0 : i32
    %c0_i32_1 = arith.constant 0 : i32
    return %c0_i32, %c0_i32_0 : i32, i32
  }
  func.func @transform_4(%arg0: i32) -> (i32, i32) {
    %c0_i32 = arith.constant 0 : i32
    %c0_i32_0 = arith.constant 0 : i32
    %c0_i32_1 = arith.constant 0 : i32
    return %c0_i32, %c0_i32_0 : i32, i32
  }
  func.func @transform_5(%arg0: i32) -> (i32, i32) {
    %c0_i32 = arith.constant 0 : i32
    %c0_i32_0 = arith.constant 0 : i32
    return %arg0, %c0_i32 : i32, i32
  }
}

</mosaic_0001>

<llo_original>
// kernel: tpu_custom_call.1
$region0: #{tpu_custom_call.1}
  #allocation0 [shape = 'u32[]', space=smem, size = 0x4, offset = 0x4, fixed_abs, tag = 'smem constant byte address 0x4 - core index']
  #allocation1 [shape = 'u32[144,128]{1,0:T(1,128)}', space=vmem, size = 0x12000, scoped, tag = 'internal scratch']
  %s0 = inlined_call_operand.hbm [shape: f32[2048,256], index: 0, kind: input, shape index: {}]
  %s1 = inlined_call_operand.hbm [shape: bf16[256,256], index: 1, kind: input, shape index: {}]
  %s2 = inlined_call_operand.hbm [shape: f32[1,256], index: 2, kind: input, shape index: {}]
  %s3 = inlined_call_operand.hbm [shape: bf16[256,256], index: 3, kind: input, shape index: {}]
  %s4 = inlined_call_operand.hbm [shape: f32[1,256], index: 4, kind: input, shape index: {}]
  %s5 = inlined_call_operand.hbm [shape: f32[2048,256], index: 5, kind: output, shape index: {}]
  %s6 = sld [smem:[#allocation0]]
  $region73: #{tpu_custom_call.1} parent=0
    _
  %s8 = ssub.s32 1, %s6
  %s9 = scalar_select 0, %s8, %s6
  $region1: #{tpu_custom_call.1} parent=0
    #allocation2 [shape = 'u8[1048576]{0}', space=vmem, size = 0x100000, scoped, tag = 'input window, operand 0']
    #allocation3 [shape = 's32[2]{0}', space=sflag, size = 0x8, scoped, tag = 'scoped memory for tpu_custom_call.1']
    #allocation4 [shape = 's32[2]{0}', space=sflag, size = 0x8, scoped, tag = 'scoped memory for tpu_custom_call.1']
    #allocation5 [shape = 'u8[131072]{0}', space=vmem, size = 0x20000, scoped, tag = 'input window, operand 1, single buffered']
    #allocation6 [shape = 's32[1]{0}', space=sflag, size = 0x4, scoped, tag = 'scoped memory for tpu_custom_call.1']
    #allocation7 [shape = 'u8[1024]{0}', space=vmem, size = 0x400, scoped, tag = 'input window, operand 2, single buffered']
    #allocation8 [shape = 'u8[131072]{0}', space=vmem, size = 0x20000, scoped, tag = 'input window, operand 3, single buffered']
    #allocation9 [shape = 's32[1]{0}', space=sflag, size = 0x4, scoped, tag = 'scoped memory for tpu_custom_call.1']
    #allocation10 [shape = 'u8[1024]{0}', space=vmem, size = 0x400, scoped, tag = 'input window, operand 4, single buffered']
    #allocation11 [shape = 'u8[1048576]{0}', space=vmem, size = 0x100000, scoped, tag = 'output window, operand 0']
    %10 = vsyncpa [#allocation3], 0
    %s11 = scalar_lea.sflag [#allocation3], 1
    %12 = vsyncpa %s11, 0
    %13 = vsyncpa [#allocation6], 0
    %14 = vsyncpa [#allocation9], 0
    %15 = vsyncpa [#allocation4], 0
    %s16 = scalar_lea.sflag [#allocation4], 1
    %17 = vsyncpa %s16, 0
    loop: start=0, step=1, limit=6
    $region2: #{tpu_custom_call.1} parent=1 // loop_pre_header
      _
    $region3: #{tpu_custom_call.1} parent=1 // loop_header
      %s19 = sphi 0, %s23
      %p20 = scmp.ge.s32.totalorder %s19, 6
      %s29 = sphi 0, %s31
      %s32 = sphi 0, %s29
      %s33 = sphi 0, %s32
      %s49 = sphi 0, %s33
      %s53 = sphi 0, %s53
      %s55 = sphi 0, %s53
      %s56 = sphi 0, %s55
      %s70 = sphi 0, %s56
      %s74 = sphi 0, %s74
      %s76 = sphi 0, %s74
      %s77 = sphi 0, %s76
      %s91 = sphi 0, %s77
      %s95 = sphi 0, %s95
      %s97 = sphi 0, %s95
      %s98 = sphi 0, %s97
      %s112 = sphi 0, %s98
      %s116 = sphi 0, %s116
      %s118 = sphi 0, %s116
      %s119 = sphi 0, %s118
      %s133 = sphi 0, %s119
      %s139 = sphi 0, %s141
      %s142 = sphi 0, %s139
      %s143 = sphi 0, %s142
      %s159 = sphi 0, %s143
    $region4: #{tpu_custom_call.1} parent=1 // loop_header_branch
      %22 = sbr.rel (%p20) target = $region8
    $region5: #{tpu_custom_call.1} parent=1 // loop_body
      %s24 = ssub.s32 %s19, 1
      %s25 = ssub.s32 %s19, 2
      %s26 = sadd.s32 %s19, 1
      %s27 = ssub.s32 %s19, %s26
      %p28 = scmp.eq.s32.totalorder %s27, 0
      %s30 = sadd.s32 %s29, 1
      %s31 = scalar_select %p28, %s29, %s30
      %p34 = pneg %p28
      %p35 = scmp.eq.s32.totalorder %s19, 3
      %p36 = por %p34, %p35
      %p37 = scmp.ne.s32.totalorder %s29, %s32
      %p38 = scmp.eq.s32.totalorder %s19, 0
      %p39 = por %p37, %p38
      %p40 = scmp.ne.s32.totalorder %s29, %s32
      %p41 = scmp.eq.s32.totalorder %s24, 3
      %p42 = por %p40, %p41
      %p43 = scmp.ne.s32.totalorder %s32, %s33
      %p44 = scmp.eq.s32.totalorder %s24, 0
      %p45 = por %p43, %p44
      %p46 = scmp.ne.s32.totalorder %s32, %s33
      %p47 = scmp.eq.s32.totalorder %s25, 3
      %p48 = por %p46, %p47
      %p50 = scmp.ne.s32.totalorder %s33, %s49
      %p51 = scmp.eq.s32.totalorder %s25, 0
      %p52 = por %p50, %p51
      %s54 = sadd.s32 %s53, 1
      %p57 = scmp.eq.s32.totalorder %s19, 3
      %p58 = scmp.ne.s32.totalorder %s53, %s55
      %p59 = scmp.eq.s32.totalorder %s19, 0
      %p60 = por %p58, %p59
      %p61 = scmp.ne.s32.totalorder %s53, %s55
      %p62 = scmp.eq.s32.totalorder %s24, 3
      %p63 = por %p61, %p62
      %p64 = scmp.ne.s32.totalorder %s55, %s56
      %p65 = scmp.eq.s32.totalorder %s24, 0
      %p66 = por %p64, %p65
      %p67 = scmp.ne.s32.totalorder %s55, %s56
      %p68 = scmp.eq.s32.totalorder %s25, 3
      %p69 = por %p67, %p68
      %p71 = scmp.ne.s32.totalorder %s56, %s70
      %p72 = scmp.eq.s32.totalorder %s25, 0
      %p73 = por %p71, %p72
      %s75 = sadd.s32 %s74, 1
      %p78 = scmp.eq.s32.totalorder %s19, 3
      %p79 = scmp.ne.s32.totalorder %s74, %s76
      %p80 = scmp.eq.s32.totalorder %s19, 0
      %p81 = por %p79, %p80
      %p82 = scmp.ne.s32.totalorder %s74, %s76
      %p83 = scmp.eq.s32.totalorder %s24, 3
      %p84 = por %p82, %p83
      %p85 = scmp.ne.s32.totalorder %s76, %s77
      %p86 = scmp.eq.s32.totalorder %s24, 0
      %p87 = por %p85, %p86
      %p88 = scmp.ne.s32.totalorder %s76, %s77
      %p89 = scmp.eq.s32.totalorder %s25, 3
      %p90 = por %p88, %p89
      %p92 = scmp.ne.s32.totalorder %s77, %s91
      %p93 = scmp.eq.s32.totalorder %s25, 0
      %p94 = por %p92, %p93
      %s96 = sadd.s32 %s95, 1
      %p99 = scmp.eq.s32.totalorder %s19, 3
      %p100 = scmp.ne.s32.totalorder %s95, %s97
      %p101 = scmp.eq.s32.totalorder %s19, 0
      %p102 = por %p100, %p101
      %p103 = scmp.ne.s32.totalorder %s95, %s97
      %p104 = scmp.eq.s32.totalorder %s24, 3
      %p105 = por %p103, %p104
      %p106 = scmp.ne.s32.totalorder %s97, %s98
      %p107 = scmp.eq.s32.totalorder %s24, 0
      %p108 = por %p106, %p107
      %p109 = scmp.ne.s32.totalorder %s97, %s98
      %p110 = scmp.eq.s32.totalorder %s25, 3
      %p111 = por %p109, %p110
      %p113 = scmp.ne.s32.totalorder %s98, %s112
      %p114 = scmp.eq.s32.totalorder %s25, 0
      %p115 = por %p113, %p114
      %s117 = sadd.s32 %s116, 1
      %p120 = scmp.eq.s32.totalorder %s19, 3
      %p121 = scmp.ne.s32.totalorder %s116, %s118
      %p122 = scmp.eq.s32.totalorder %s19, 0
      %p123 = por %p121, %p122
      %p124 = scmp.ne.s32.totalorder %s116, %s118
      %p125 = scmp.eq.s32.totalorder %s24, 3
      %p126 = por %p124, %p125
      %p127 = scmp.ne.s32.totalorder %s118, %s119
      %p128 = scmp.eq.s32.totalorder %s24, 0
      %p129 = por %p127, %p128
      %p130 = scmp.ne.s32.totalorder %s118, %s119
      %p131 = scmp.eq.s32.totalorder %s25, 3
      %p132 = por %p130, %p131
      %p134 = scmp.ne.s32.totalorder %s119, %s133
      %p135 = scmp.eq.s32.totalorder %s25, 0
      %p136 = por %p134, %p135
      %s137 = ssub.s32 %s19, %s26
      %p138 = scmp.eq.s32.totalorder %s137, 0
      %s140 = sadd.s32 %s139, 1
      %s141 = scalar_select %p138, %s139, %s140
      %p144 = pneg %p138
      %p145 = scmp.eq.s32.totalorder %s19, 3
      %p146 = por %p144, %p145
      %p147 = scmp.ne.s32.totalorder %s139, %s142
      %p148 = scmp.eq.s32.totalorder %s19, 0
      %p149 = por %p147, %p148
      %p150 = scmp.ne.s32.totalorder %s139, %s142
      %p151 = scmp.eq.s32.totalorder %s24, 3
      %p152 = por %p150, %p151
      %p153 = scmp.ne.s32.totalorder %s142, %s143
      %p154 = scmp.eq.s32.totalorder %s24, 0
      %p155 = por %p153, %p154
      %p156 = scmp.ne.s32.totalorder %s142, %s143
      %p157 = scmp.eq.s32.totalorder %s25, 3
      %p158 = por %p156, %p157
      %p160 = scmp.ne.s32.totalorder %s143, %s159
      %p161 = scmp.eq.s32.totalorder %s25, 0
      %p162 = por %p160, %p161
      %p163 = scmp.le.s32.totalorder 1, %s19
      %p164 = scmp.lt.s32.totalorder %s19, 5
      %p165 = pnand %p163, %p164
      %p166 = pneg %p165
      // Predicated region
      $region9: #{tpu_custom_call.1} parent=5 // pred_check
        _
      $region10: #{tpu_custom_call.1} parent=5 // pred_check_branch
        %168 = sbr.rel (%p165) target = $region12
      $region11: #{tpu_custom_call.1} parent=5 // pred_region
        %s169 = ssub.s32 %s19, 1
        // Predicated region
        $region13: #{tpu_custom_call.1} parent=11 // pred_check
          %p170 = pneg %p66
        $region14: #{tpu_custom_call.1} parent=11 // pred_check_branch
          %172 = sbr.rel (%p170) target = $region16
        $region15: #{tpu_custom_call.1} parent=11 // pred_region
          %s174 = ssub.s32 4096, 4096
          %175 = vsyncadd [#allocation6], %s174
          %s176 = sshll.u32 [#allocation5], 4
          %s177 = int_to_ptr.vmem [resolvable:$true] %s176
          %182 = dma.hbm_to_vmem [thread:$0]  %s1, 4096, %s177, [#allocation6], 128, 128, 8
        $region16: #{tpu_custom_call.1} parent=11 // pred_fallthru
          _
        // Predicated region
        $region17: #{tpu_custom_call.1} parent=11 // pred_check
          %p183 = pneg %p87
        $region18: #{tpu_custom_call.1} parent=11 // pred_check_branch
          %185 = sbr.rel (%p183) target = $region20
        $region19: #{tpu_custom_call.1} parent=11 // pred_region
          %s187 = ssub.s32 32, 32
          %188 = vsyncadd [#allocation6], %s187
          %s190 = sshll.u32 [#allocation7], 4
          %s191 = int_to_ptr.vmem [resolvable:$true] %s190
          %193 = dma.hbm_to_vmem [thread:$0]  %s2, 32, %s191, [#allocation6]
        $region20: #{tpu_custom_call.1} parent=11 // pred_fallthru
          _
        // Predicated region
        $region21: #{tpu_custom_call.1} parent=11 // pred_check
          %p194 = pneg %p108
        $region22: #{tpu_custom_call.1} parent=11 // pred_check_branch
          %196 = sbr.rel (%p194) target = $region24
        $region23: #{tpu_custom_call.1} parent=11 // pred_region
          %s198 = ssub.s32 4096, 4096
          %199 = vsyncadd [#allocation9], %s198
          %s200 = sshll.u32 [#allocation8], 4
          %s201 = int_to_ptr.vmem [resolvable:$true] %s200
          %206 = dma.hbm_to_vmem [thread:$0]  %s3, 4096, %s201, [#allocation9], 128, 128, 8
        $region24: #{tpu_custom_call.1} parent=11 // pred_fallthru
          _
        // Predicated region
        $region25: #{tpu_custom_call.1} parent=11 // pred_check
          %p207 = pneg %p129
        $region26: #{tpu_custom_call.1} parent=11 // pred_check_branch
          %209 = sbr.rel (%p207) target = $region28
        $region27: #{tpu_custom_call.1} parent=11 // pred_region
          %s211 = ssub.s32 32, 32
          %212 = vsyncadd [#allocation9], %s211
          %s214 = sshll.u32 [#allocation10], 4
          %s215 = int_to_ptr.vmem [resolvable:$true] %s214
          %217 = dma.hbm_to_vmem [thread:$0]  %s4, 32, %s215, [#allocation9]
        $region28: #{tpu_custom_call.1} parent=11 // pred_fallthru
          _
      $region12: #{tpu_custom_call.1} parent=5 // pred_fallthru
        _
      %p218 = scmp.lt.s32.totalorder %s19, 4
      // Predicated region
      $region29: #{tpu_custom_call.1} parent=5 // pred_check
        %p219 = pneg %p218
      $region30: #{tpu_custom_call.1} parent=5 // pred_check_branch
        %221 = sbr.rel (%p219) target = $region32
      $region31: #{tpu_custom_call.1} parent=5 // pred_region
        // Predicated region
        $region33: #{tpu_custom_call.1} parent=31 // pred_check
          %p222 = pneg %p39
        $region34: #{tpu_custom_call.1} parent=31 // pred_check_branch
          %224 = sbr.rel (%p222) target = $region36
        $region35: #{tpu_custom_call.1} parent=31 // pred_region
          %s225 = sand.u32 %s29, 1
          %s226 = scalar_lea.sflag [#allocation3], %s225
          %s227 = sand.u32 %s29, 1
          %s228 = smul.addr %s227, 1024
          %s229 = scalar_lea.vmem [#allocation2], %s228
          %s230 = smul.u32 64, %s19
          %s232 = ssub.s32 16384, 16384
          %233 = vsyncadd %s226, %s232
          %s234 = smul.addr %s230, 2
          %s235 = smul.addr %s234, 128
          %s236 = scalar_lea.hbm %s0, %s235
          %s237 = sshll.u32 %s229, 4
          %s238 = int_to_ptr.vmem [resolvable:$true] %s237
          %243 = dma.hbm_to_vmem [thread:$0]  %s236, 16384, %s238, %s226, 256, 256, 16
        $region36: #{tpu_custom_call.1} parent=31 // pred_fallthru
          _
      $region32: #{tpu_custom_call.1} parent=5 // pred_fallthru
        _
      %p244 = scmp.le.s32.totalorder 1, %s19
      %p245 = scmp.lt.s32.totalorder %s19, 5
      %p246 = pnand %p244, %p245
      %p247 = pneg %p246
      // Predicated region
      $region37: #{tpu_custom_call.1} parent=5 // pred_check
        _
      $region38: #{tpu_custom_call.1} parent=5 // pred_check_branch
        %249 = sbr.rel (%p246) target = $region40
      $region39: #{tpu_custom_call.1} parent=5 // pred_region
        %s250 = ssub.s32 %s19, 1
        %s251 = sand.u32 %s32, 1
        %s252 = scalar_lea.sflag [#allocation3], %s251
        %s253 = sand.u32 %s32, 1
        %s254 = smul.addr %s253, 1024
        %s255 = scalar_lea.vmem [#allocation2], %s254
        // Predicated region
        $region41: #{tpu_custom_call.1} parent=39 // pred_check
          %p256 = pneg %p45
        $region42: #{tpu_custom_call.1} parent=39 // pred_check_branch
          %258 = sbr.rel (%p256) target = $region44
        $region43: #{tpu_custom_call.1} parent=39 // pred_region
          %259 = dma.done %s252, 16384
        $region44: #{tpu_custom_call.1} parent=39 // pred_fallthru
          _
        // Predicated region
        $region45: #{tpu_custom_call.1} parent=39 // pred_check
          %p260 = pneg %p66
        $region46: #{tpu_custom_call.1} parent=39 // pred_check_branch
          %262 = sbr.rel (%p260) target = $region48
        $region47: #{tpu_custom_call.1} parent=39 // pred_region
          %263 = dma.done [#allocation6], 4096
        $region48: #{tpu_custom_call.1} parent=39 // pred_fallthru
          _
        // Predicated region
        $region49: #{tpu_custom_call.1} parent=39 // pred_check
          %p264 = pneg %p87
        $region50: #{tpu_custom_call.1} parent=39 // pred_check_branch
          %266 = sbr.rel (%p264) target = $region52
        $region51: #{tpu_custom_call.1} parent=39 // pred_region
          %267 = dma.done [#allocation6], 32
        $region52: #{tpu_custom_call.1} parent=39 // pred_fallthru
          _
        // Predicated region
        $region53: #{tpu_custom_call.1} parent=39 // pred_check
          %p268 = pneg %p108
        $region54: #{tpu_custom_call.1} parent=39 // pred_check_branch
          %270 = sbr.rel (%p268) target = $region56
        $region55: #{tpu_custom_call.1} parent=39 // pred_region
          %271 = dma.done [#allocation9], 4096
        $region56: #{tpu_custom_call.1} parent=39 // pred_fallthru
          _
        // Predicated region
        $region57: #{tpu_custom_call.1} parent=39 // pred_check
          %p272 = pneg %p129
        $region58: #{tpu_custom_call.1} parent=39 // pred_check_branch
          %274 = sbr.rel (%p272) target = $region60
        $region59: #{tpu_custom_call.1} parent=39 // pred_region
          %275 = dma.done [#allocation9], 32
        $region60: #{tpu_custom_call.1} parent=39 // pred_fallthru
          _
        %s276 = sand.u32 %s32, 1
        %s277 = scalar_lea.sflag [#allocation3], %s276
        %s278 = sand.u32 %s32, 1
        %s279 = smul.addr %s278, 1024
        %s280 = scalar_lea.vmem [#allocation2], %s279
        %p281 = pneg %p45
        %p282 = pneg %p42
        %p283 = pneg %p66
        %p284 = pneg %p63
        %p285 = pneg %p87
        %p286 = pneg %p84
        %p287 = pneg %p108
        %p288 = pneg %p105
        %p289 = pneg %p129
        %p290 = pneg %p126
        %p291 = pneg %p155
        %p292 = pneg %p152
        %s293 = sand.u32 %s142, 1
        %s294 = scalar_lea.sflag [#allocation4], %s293
        %s295 = sand.u32 %s142, 1
        %s296 = smul.addr %s295, 1024
        %s297 = scalar_lea.vmem [#allocation11], %s296
        %s298 = smul.u32 64, %s24
        %s299 = smul.u32 64, %s24
        %v300 = vld [vmem:[%s255] sm:$0xff]
        %v301 = vld [vmem:[%s255 + $0x8] sm:$0xff]
        %v302 = vld [vmem:[%s255 + $0x10] sm:$0xff]
        %v303 = vld [vmem:[%s255 + $0x18] sm:$0xff]
        %v304 = vld [vmem:[%s255 + $0x20] sm:$0xff]
        %v305 = vld [vmem:[%s255 + $0x28] sm:$0xff]
        %v306 = vld [vmem:[%s255 + $0x30] sm:$0xff]
        %v307 = vld [vmem:[%s255 + $0x38] sm:$0xff]
        %v308 = vld [vmem:[%s255 + $0x40] sm:$0xff]
        %v309 = vld [vmem:[%s255 + $0x48] sm:$0xff]
        %v310 = vld [vmem:[%s255 + $0x50] sm:$0xff]
        %v311 = vld [vmem:[%s255 + $0x58] sm:$0xff]
        %v312 = vld [vmem:[%s255 + $0x60] sm:$0xff]
        %v313 = vld [vmem:[%s255 + $0x68] sm:$0xff]
        %v314 = vld [vmem:[%s255 + $0x70] sm:$0xff]
        %v315 = vld [vmem:[%s255 + $0x78] sm:$0xff]
        %v316 = vld [vmem:[%s255 + $0x80] sm:$0xff]
        %v317 = vld [vmem:[%s255 + $0x88] sm:$0xff]
        %v318 = vld [vmem:[%s255 + $0x90] sm:$0xff]
        %v319 = vld [vmem:[%s255 + $0x98] sm:$0xff]
        %v320 = vld [vmem:[%s255 + $0xa0] sm:$0xff]
        %v321 = vld [vmem:[%s255 + $0xa8] sm:$0xff]
        %v322 = vld [vmem:[%s255 + $0xb0] sm:$0xff]
        %v323 = vld [vmem:[%s255 + $0xb8] sm:$0xff]
        %v324 = vld [vmem:[%s255 + $0xc0] sm:$0xff]
        %v325 = vld [vmem:[%s255 + $0xc8] sm:$0xff]
        %v326 = vld [vmem:[%s255 + $0xd0] sm:$0xff]
        %v327 = vld [vmem:[%s255 + $0xd8] sm:$0xff]
        %v328 = vld [vmem:[%s255 + $0xe0] sm:$0xff]
        %v329 = vld [vmem:[%s255 + $0xe8] sm:$0xff]
        %v330 = vld [vmem:[%s255 + $0xf0] sm:$0xff]
        %v331 = vld [vmem:[%s255 + $0xf8] sm:$0xff]
        %v332 = vld [vmem:[%s255 + $0x100] sm:$0xff]
        %v333 = vld [vmem:[%s255 + $0x108] sm:$0xff]
        %v334 = vld [vmem:[%s255 + $0x110] sm:$0xff]
        %v335 = vld [vmem:[%s255 + $0x118] sm:$0xff]
        %v336 = vld [vmem:[%s255 + $0x120] sm:$0xff]
        %v337 = vld [vmem:[%s255 + $0x128] sm:$0xff]
        %v338 = vld [vmem:[%s255 + $0x130] sm:$0xff]
        %v339 = vld [vmem:[%s255 + $0x138] sm:$0xff]
        %v340 = vld [vmem:[%s255 + $0x140] sm:$0xff]
        %v341 = vld [vmem:[%s255 + $0x148] sm:$0xff]
        %v342 = vld [vmem:[%s255 + $0x150] sm:$0xff]
        %v343 = vld [vmem:[%s255 + $0x158] sm:$0xff]
        %v344 = vld [vmem:[%s255 + $0x160] sm:$0xff]
        %v345 = vld [vmem:[%s255 + $0x168] sm:$0xff]
        %v346 = vld [vmem:[%s255 + $0x170] sm:$0xff]
        %v347 = vld [vmem:[%s255 + $0x178] sm:$0xff]
        %v348 = vld [vmem:[%s255 + $0x180] sm:$0xff]
        %v349 = vld [vmem:[%s255 + $0x188] sm:$0xff]
        %v350 = vld [vmem:[%s255 + $0x190] sm:$0xff]
        %v351 = vld [vmem:[%s255 + $0x198] sm:$0xff]
        %v352 = vld [vmem:[%s255 + $0x1a0] sm:$0xff]
        %v353 = vld [vmem:[%s255 + $0x1a8] sm:$0xff]
        %v354 = vld [vmem:[%s255 + $0x1b0] sm:$0xff]
        %v355 = vld [vmem:[%s255 + $0x1b8] sm:$0xff]
        %v356 = vld [vmem:[%s255 + $0x1c0] sm:$0xff]
        %v357 = vld [vmem:[%s255 + $0x1c8] sm:$0xff]
        %v358 = vld [vmem:[%s255 + $0x1d0] sm:$0xff]
        %v359 = vld [vmem:[%s255 + $0x1d8] sm:$0xff]
        %v360 = vld [vmem:[%s255 + $0x1e0] sm:$0xff]
        %v361 = vld [vmem:[%s255 + $0x1e8] sm:$0xff]
        %v362 = vld [vmem:[%s255 + $0x1f0] sm:$0xff]
        %v363 = vld [vmem:[%s255 + $0x1f8] sm:$0xff]
        %v364 = vld [vmem:[%s255 + $0x200] sm:$0xff]
        %v365 = vld [vmem:[%s255 + $0x208] sm:$0xff]
        %v366 = vld [vmem:[%s255 + $0x210] sm:$0xff]
        %v367 = vld [vmem:[%s255 + $0x218] sm:$0xff]
        %v368 = vld [vmem:[%s255 + $0x220] sm:$0xff]
        %v369 = vld [vmem:[%s255 + $0x228] sm:$0xff]
        %v370 = vld [vmem:[%s255 + $0x230] sm:$0xff]
        %v371 = vld [vmem:[%s255 + $0x238] sm:$0xff]
        %v372 = vld [vmem:[%s255 + $0x240] sm:$0xff]
        %v373 = vld [vmem:[%s255 + $0x248] sm:$0xff]
        %v374 = vld [vmem:[%s255 + $0x250] sm:$0xff]
        %v375 = vld [vmem:[%s255 + $0x258] sm:$0xff]
        %v376 = vld [vmem:[%s255 + $0x260] sm:$0xff]
        %v377 = vld [vmem:[%s255 + $0x268] sm:$0xff]
        %v378 = vld [vmem:[%s255 + $0x270] sm:$0xff]
        %v379 = vld [vmem:[%s255 + $0x278] sm:$0xff]
        %v380 = vld [vmem:[%s255 + $0x280] sm:$0xff]
        %v381 = vld [vmem:[%s255 + $0x288] sm:$0xff]
        %v382 = vld [vmem:[%s255 + $0x290] sm:$0xff]
        %v383 = vld [vmem:[%s255 + $0x298] sm:$0xff]
        %v384 = vld [vmem:[%s255 + $0x2a0] sm:$0xff]
        %v385 = vld [vmem:[%s255 + $0x2a8] sm:$0xff]
        %v386 = vld [vmem:[%s255 + $0x2b0] sm:$0xff]
        %v387 = vld [vmem:[%s255 + $0x2b8] sm:$0xff]
        %v388 = vld [vmem:[%s255 + $0x2c0] sm:$0xff]
        %v389 = vld [vmem:[%s255 + $0x2c8] sm:$0xff]
        %v390 = vld [vmem:[%s255 + $0x2d0] sm:$0xff]
        %v391 = vld [vmem:[%s255 + $0x2d8] sm:$0xff]
        %v392 = vld [vmem:[%s255 + $0x2e0] sm:$0xff]
        %v393 = vld [vmem:[%s255 + $0x2e8] sm:$0xff]
        %v394 = vld [vmem:[%s255 + $0x2f0] sm:$0xff]
        %v395 = vld [vmem:[%s255 + $0x2f8] sm:$0xff]
        %v396 = vld [vmem:[%s255 + $0x300] sm:$0xff]
        %v397 = vld [vmem:[%s255 + $0x308] sm:$0xff]
        %v398 = vld [vmem:[%s255 + $0x310] sm:$0xff]
        %v399 = vld [vmem:[%s255 + $0x318] sm:$0xff]
        %v400 = vld [vmem:[%s255 + $0x320] sm:$0xff]
        %v401 = vld [vmem:[%s255 + $0x328] sm:$0xff]
        %v402 = vld [vmem:[%s255 + $0x330] sm:$0xff]
        %v403 = vld [vmem:[%s255 + $0x338] sm:$0xff]
        %v404 = vld [vmem:[%s255 + $0x340] sm:$0xff]
        %v405 = vld [vmem:[%s255 + $0x348] sm:$0xff]
        %v406 = vld [vmem:[%s255 + $0x350] sm:$0xff]
        %v407 = vld [vmem:[%s255 + $0x358] sm:$0xff]
        %v408 = vld [vmem:[%s255 + $0x360] sm:$0xff]
        %v409 = vld [vmem:[%s255 + $0x368] sm:$0xff]
        %v410 = vld [vmem:[%s255 + $0x370] sm:$0xff]
        %v411 = vld [vmem:[%s255 + $0x378] sm:$0xff]
        %v412 = vld [vmem:[%s255 + $0x380] sm:$0xff]
        %v413 = vld [vmem:[%s255 + $0x388] sm:$0xff]
        %v414 = vld [vmem:[%s255 + $0x390] sm:$0xff]
        %v415 = vld [vmem:[%s255 + $0x398] sm:$0xff]
        %v416 = vld [vmem:[%s255 + $0x3a0] sm:$0xff]
        %v417 = vld [vmem:[%s255 + $0x3a8] sm:$0xff]
        %v418 = vld [vmem:[%s255 + $0x3b0] sm:$0xff]
        %v419 = vld [vmem:[%s255 + $0x3b8] sm:$0xff]
        %v420 = vld [vmem:[%s255 + $0x3c0] sm:$0xff]
        %v421 = vld [vmem:[%s255 + $0x3c8] sm:$0xff]
        %v422 = vld [vmem:[%s255 + $0x3d0] sm:$0xff]
        %v423 = vld [vmem:[%s255 + $0x3d8] sm:$0xff]
        %v424 = vld [vmem:[%s255 + $0x3e0] sm:$0xff]
        %v425 = vld [vmem:[%s255 + $0x3e8] sm:$0xff]
        %v426 = vld [vmem:[%s255 + $0x3f0] sm:$0xff]
        %v427 = vld [vmem:[%s255 + $0x3f8] sm:$0xff]
        %v428 = vpack.c.bf16 %v302, %v300
        %v429 = vpack.c.bf16 %v303, %v301
        %v430 = vpack.c.bf16 %v306, %v304
        %v431 = vpack.c.bf16 %v307, %v305
        %v432 = vpack.c.bf16 %v310, %v308
        %v433 = vpack.c.bf16 %v311, %v309
        %v434 = vpack.c.bf16 %v314, %v312
        %v435 = vpack.c.bf16 %v315, %v313
        %v436 = vpack.c.bf16 %v318, %v316
        %v437 = vpack.c.bf16 %v319, %v317
        %v438 = vpack.c.bf16 %v322, %v320
        %v439 = vpack.c.bf16 %v323, %v321
        %v440 = vpack.c.bf16 %v326, %v324
        %v441 = vpack.c.bf16 %v327, %v325
        %v442 = vpack.c.bf16 %v330, %v328
        %v443 = vpack.c.bf16 %v331, %v329
        %v444 = vpack.c.bf16 %v334, %v332
        %v445 = vpack.c.bf16 %v335, %v333
        %v446 = vpack.c.bf16 %v338, %v336
        %v447 = vpack.c.bf16 %v339, %v337
        %v448 = vpack.c.bf16 %v342, %v340
        %v449 = vpack.c.bf16 %v343, %v341
        %v450 = vpack.c.bf16 %v346, %v344
        %v451 = vpack.c.bf16 %v347, %v345
        %v452 = vpack.c.bf16 %v350, %v348
        %v453 = vpack.c.bf16 %v351, %v349
        %v454 = vpack.c.bf16 %v354, %v352
        %v455 = vpack.c.bf16 %v355, %v353
        %v456 = vpack.c.bf16 %v358, %v356
        %v457 = vpack.c.bf16 %v359, %v357
        %v458 = vpack.c.bf16 %v362, %v360
        %v459 = vpack.c.bf16 %v363, %v361
        %v460 = vpack.c.bf16 %v366, %v364
        %v461 = vpack.c.bf16 %v367, %v365
        %v462 = vpack.c.bf16 %v370, %v368
        %v463 = vpack.c.bf16 %v371, %v369
        %v464 = vpack.c.bf16 %v374, %v372
        %v465 = vpack.c.bf16 %v375, %v373
        %v466 = vpack.c.bf16 %v378, %v376
        %v467 = vpack.c.bf16 %v379, %v377
        %v468 = vpack.c.bf16 %v382, %v380
        %v469 = vpack.c.bf16 %v383, %v381
        %v470 = vpack.c.bf16 %v386, %v384
        %v471 = vpack.c.bf16 %v387, %v385
        %v472 = vpack.c.bf16 %v390, %v388
        %v473 = vpack.c.bf16 %v391, %v389
        %v474 = vpack.c.bf16 %v394, %v392
        %v475 = vpack.c.bf16 %v395, %v393
        %v476 = vpack.c.bf16 %v398, %v396
        %v477 = vpack.c.bf16 %v399, %v397
        %v478 = vpack.c.bf16 %v402, %v400
        %v479 = vpack.c.bf16 %v403, %v401
        %v480 = vpack.c.bf16 %v406, %v404
        %v481 = vpack.c.bf16 %v407, %v405
        %v482 = vpack.c.bf16 %v410, %v408
        %v483 = vpack.c.bf16 %v411, %v409
        %v484 = vpack.c.bf16 %v414, %v412
        %v485 = vpack.c.bf16 %v415, %v413
        %v486 = vpack.c.bf16 %v418, %v416
        %v487 = vpack.c.bf16 %v419, %v417
        %v488 = vpack.c.bf16 %v422, %v420
        %v489 = vpack.c.bf16 %v423, %v421
        %v490 = vpack.c.bf16 %v426, %v424
        %v491 = vpack.c.bf16 %v427, %v425
        %v492 = vld [vmem:[#allocation5] sm:$0xff]
        %v493 = vld [vmem:[#allocation5 + $0x8] sm:$0xff]
        %v494 = vld [vmem:[#allocation5 + $0x10] sm:$0xff]
        %v495 = vld [vmem:[#allocation5 + $0x18] sm:$0xff]
        %v496 = vld [vmem:[#allocation5 + $0x20] sm:$0xff]
        %v497 = vld [vmem:[#allocation5 + $0x28] sm:$0xff]
        %v498 = vld [vmem:[#allocation5 + $0x30] sm:$0xff]
        %v499 = vld [vmem:[#allocation5 + $0x38] sm:$0xff]
        %v500 = vld [vmem:[#allocation5 + $0x40] sm:$0xff]
        %v501 = vld [vmem:[#allocation5 + $0x48] sm:$0xff]
        %v502 = vld [vmem:[#allocation5 + $0x50] sm:$0xff]
        %v503 = vld [vmem:[#allocation5 + $0x58] sm:$0xff]
        %v504 = vld [vmem:[#allocation5 + $0x60] sm:$0xff]
        %v505 = vld [vmem:[#allocation5 + $0x68] sm:$0xff]
        %v506 = vld [vmem:[#allocation5 + $0x70] sm:$0xff]
        %v507 = vld [vmem:[#allocation5 + $0x78] sm:$0xff]
        %v508 = vld [vmem:[#allocation5 + $0x80] sm:$0xff]
        %v509 = vld [vmem:[#allocation5 + $0x88] sm:$0xff]
        %v510 = vld [vmem:[#allocation5 + $0x90] sm:$0xff]
        %v511 = vld [vmem:[#allocation5 + $0x98] sm:$0xff]
        %v512 = vld [vmem:[#allocation5 + $0xa0] sm:$0xff]
        %v513 = vld [vmem:[#allocation5 + $0xa8] sm:$0xff]
        %v514 = vld [vmem:[#allocation5 + $0xb0] sm:$0xff]
        %v515 = vld [vmem:[#allocation5 + $0xb8] sm:$0xff]
        %v516 = vld [vmem:[#allocation5 + $0xc0] sm:$0xff]
        %v517 = vld [vmem:[#allocation5 + $0xc8] sm:$0xff]
        %v518 = vld [vmem:[#allocation5 + $0xd0] sm:$0xff]
        %v519 = vld [vmem:[#allocation5 + $0xd8] sm:$0xff]
        %v520 = vld [vmem:[#allocation5 + $0xe0] sm:$0xff]
        %v521 = vld [vmem:[#allocation5 + $0xe8] sm:$0xff]
        %v522 = vld [vmem:[#allocation5 + $0xf0] sm:$0xff]
        %v523 = vld [vmem:[#allocation5 + $0xf8] sm:$0xff]
        %v524 = vld [vmem:[#allocation7] sm:$0x3]
        %v526 = vlaneseq
        %v527 = vshrl.u32 %v526, 7
        %v528 = vsub.s32 0, %v527
        %v529 = vrot.slane %v524, %v528
        %v530 = vlaneseq
        %v531 = vshrl.u32 %v530, 7
        %v532 = vsub.s32 1, %v531
        %v533 = vrot.slane %v524, %v532
        %v568 = vunpack.c.l.b16 %v492
        %v569 = vunpack.c.h.b16 %v492
        %v570 = vunpack.c.l.b16 %v493
        %v571 = vunpack.c.h.b16 %v493
        %v572 = vunpack.c.l.b16 %v494
        %v573 = vunpack.c.h.b16 %v494
        %v574 = vunpack.c.l.b16 %v495
        %v575 = vunpack.c.h.b16 %v495
        %v576 = vunpack.c.l.b16 %v496
        %v577 = vunpack.c.h.b16 %v496
        %v578 = vunpack.c.l.b16 %v497
        %v579 = vunpack.c.h.b16 %v497
        %v580 = vunpack.c.l.b16 %v498
        %v581 = vunpack.c.h.b16 %v498
        %v582 = vunpack.c.l.b16 %v499
        %v583 = vunpack.c.h.b16 %v499
        %v584 = vunpack.c.l.b16 %v500
        %v585 = vunpack.c.h.b16 %v500
        %v586 = vunpack.c.l.b16 %v501
        %v587 = vunpack.c.h.b16 %v501
        %v588 = vunpack.c.l.b16 %v502
        %v589 = vunpack.c.h.b16 %v502
        %v590 = vunpack.c.l.b16 %v503
        %v591 = vunpack.c.h.b16 %v503
        %v592 = vunpack.c.l.b16 %v504
        %v593 = vunpack.c.h.b16 %v504
        %v594 = vunpack.c.l.b16 %v505
        %v595 = vunpack.c.h.b16 %v505
        %v596 = vunpack.c.l.b16 %v506
        %v597 = vunpack.c.h.b16 %v506
        %v598 = vunpack.c.l.b16 %v507
        %v599 = vunpack.c.h.b16 %v507
        %v600 = vunpack.c.l.b16 %v508
        %v601 = vunpack.c.h.b16 %v508
        %v602 = vunpack.c.l.b16 %v509
        %v603 = vunpack.c.h.b16 %v509
        %v604 = vunpack.c.l.b16 %v510
        %v605 = vunpack.c.h.b16 %v510
        %v606 = vunpack.c.l.b16 %v511
        %v607 = vunpack.c.h.b16 %v511
        %v608 = vunpack.c.l.b16 %v512
        %v609 = vunpack.c.h.b16 %v512
        %v610 = vunpack.c.l.b16 %v513
        %v611 = vunpack.c.h.b16 %v513
        %v612 = vunpack.c.l.b16 %v514
        %v613 = vunpack.c.h.b16 %v514
        %v614 = vunpack.c.l.b16 %v515
        %v615 = vunpack.c.h.b16 %v515
        %v616 = vunpack.c.l.b16 %v516
        %v617 = vunpack.c.h.b16 %v516
        %v618 = vunpack.c.l.b16 %v517
        %v619 = vunpack.c.h.b16 %v517
        %v620 = vunpack.c.l.b16 %v518
        %v621 = vunpack.c.h.b16 %v518
        %v622 = vunpack.c.l.b16 %v519
        %v623 = vunpack.c.h.b16 %v519
        %v624 = vunpack.c.l.b16 %v520
        %v625 = vunpack.c.h.b16 %v520
        %v626 = vunpack.c.l.b16 %v521
        %v627 = vunpack.c.h.b16 %v521
        %v628 = vunpack.c.l.b16 %v522
        %v629 = vunpack.c.h.b16 %v522
        %v630 = vunpack.c.l.b16 %v523
        %v631 = vunpack.c.h.b16 %v523
        %v632 = vpack.c.b16 %v570, %v568
        %v633 = vpack.c.b16 %v571, %v569
        %v634 = vpack.c.b16 %v574, %v572
        %v635 = vpack.c.b16 %v575, %v573
        %v636 = vpack.c.b16 %v578, %v576
        %v637 = vpack.c.b16 %v579, %v577
        %v638 = vpack.c.b16 %v582, %v580
        %v639 = vpack.c.b16 %v583, %v581
        %v640 = vpack.c.b16 %v586, %v584
        %v641 = vpack.c.b16 %v587, %v585
        %v642 = vpack.c.b16 %v590, %v588
        %v643 = vpack.c.b16 %v591, %v589
        %v644 = vpack.c.b16 %v594, %v592
        %v645 = vpack.c.b16 %v595, %v593
        %v646 = vpack.c.b16 %v598, %v596
        %v647 = vpack.c.b16 %v599, %v597
        %v648 = vpack.c.b16 %v602, %v600
        %v649 = vpack.c.b16 %v603, %v601
        %v650 = vpack.c.b16 %v606, %v604
        %v651 = vpack.c.b16 %v607, %v605
        %v652 = vpack.c.b16 %v610, %v608
        %v653 = vpack.c.b16 %v611, %v609
        %v654 = vpack.c.b16 %v614, %v612
        %v655 = vpack.c.b16 %v615, %v613
        %v656 = vpack.c.b16 %v618, %v616
        %v657 = vpack.c.b16 %v619, %v617
        %v658 = vpack.c.b16 %v622, %v620
        %v659 = vpack.c.b16 %v623, %v621
        %v660 = vpack.c.b16 %v626, %v624
        %v661 = vpack.c.b16 %v627, %v625
        %v662 = vpack.c.b16 %v630, %v628
        %v663 = vpack.c.b16 %v631, %v629
        %696 = vmatprep.subr.bf16.mxu0 %v647
        %697 = vmatpush1.bf16.msra.mxu0 %v646
        %698 = vmatprep.subr.bf16.mxu0 %v645
        %699 = vmatpush1.bf16.msra.mxu0 %v644
        %700 = vmatprep.subr.bf16.mxu0 %v643
        %701 = vmatpush1.bf16.msra.mxu0 %v642
        %702 = vmatprep.subr.bf16.mxu0 %v641
        %703 = vmatpush1.bf16.msra.mxu0 %v640
        %704 = vmatprep.subr.bf16.mxu0 %v639
        %705 = vmatpush1.bf16.msra.mxu0 %v638
        %706 = vmatprep.subr.bf16.mxu0 %v637
        %707 = vmatpush1.bf16.msra.mxu0 %v636
        %708 = vmatprep.subr.bf16.mxu0 %v635
        %709 = vmatpush1.bf16.msra.mxu0 %v634
        %710 = vmatprep.subr.bf16.mxu0 %v633
        %711 = vmatpush1.bf16.msra.mxu0 %v632
        %712 = vmatprep.subr.bf16.mxu0 %v663
        %713 = vmatpush2.bf16.msra.mxu0 %v662
        %714 = vmatprep.subr.bf16.mxu0 %v661
        %715 = vmatpush2.bf16.msra.mxu0 %v660
        %716 = vmatprep.subr.bf16.mxu0 %v659
        %717 = vmatpush2.bf16.msra.mxu0 %v658
        %718 = vmatprep.subr.bf16.mxu0 %v657
        %719 = vmatpush2.bf16.msra.mxu0 %v656
        %720 = vmatprep.subr.bf16.mxu0 %v655
        %721 = vmatpush2.bf16.msra.mxu0 %v654
        %722 = vmatprep.subr.bf16.mxu0 %v653
        %723 = vmatpush2.bf16.msra.mxu0 %v652
        %724 = vmatprep.subr.bf16.mxu0 %v651
        %725 = vmatpush2.bf16.msra.mxu0 %v650
        %726 = vmatprep.subr.bf16.mxu0 %v649
        %727 = vmatpush2.bf16.msra.mxu0 %v648
        %728 = vmatprep.mubr.bf16.mxu0 %v429
        %729 = vmatmul.mubr.bf16.gmra.mxu0 %v428
        %v730 = vpop.f32.mrf.mxu0
        %v731 = vadd.f32 %v529, %v730
        %v732 = vpop.f32.mrf.mxu0
        %v733 = vadd.f32 %v533, %v732
        %v734 = vpop.f32.mrf.mxu0
        %v735 = vadd.f32 %v529, %v734
        %v736 = vpop.f32.mrf.mxu0
        %v737 = vadd.f32 %v533, %v736
        %738 = vmatprep.mubr.bf16.mxu0 %v431
        %739 = vmatmul.mubr.bf16.gmra.mxu0 %v430
        %v740 = vpop.f32.mrf.mxu0
        %v741 = vadd.f32 %v529, %v740
        %v742 = vpop.f32.mrf.mxu0
        %v743 = vadd.f32 %v533, %v742
        %v744 = vpop.f32.mrf.mxu0
        %v745 = vadd.f32 %v529, %v744
        %v746 = vpop.f32.mrf.mxu0
        %v747 = vadd.f32 %v533, %v746
        %748 = vmatprep.mubr.bf16.mxu0 %v433
        %749 = vmatmul.mubr.bf16.gmra.mxu0 %v432
        %v750 = vpop.f32.mrf.mxu0
        %v751 = vadd.f32 %v529, %v750
        %v752 = vpop.f32.mrf.mxu0
        %v753 = vadd.f32 %v533, %v752
        %v754 = vpop.f32.mrf.mxu0
        %v755 = vadd.f32 %v529, %v754
        %v756 = vpop.f32.mrf.mxu0
        %v757 = vadd.f32 %v533, %v756
        %758 = vmatprep.mubr.bf16.mxu0 %v435
        %759 = vmatmul.mubr.bf16.gmra.mxu0 %v434
        %v760 = vpop.f32.mrf.mxu0
        %v761 = vadd.f32 %v529, %v760
        %v762 = vpop.f32.mrf.mxu0
        %v763 = vadd.f32 %v533, %v762
        %v764 = vpop.f32.mrf.mxu0
        %v765 = vadd.f32 %v529, %v764
        %v766 = vpop.f32.mrf.mxu0
        %v767 = vadd.f32 %v533, %v766
        %768 = vmatprep.mubr.bf16.mxu0 %v437
        %769 = vmatmul.mubr.bf16.gmra.mxu0 %v436
        %v770 = vpop.f32.mrf.mxu0
        %v771 = vadd.f32 %v529, %v770
        %v772 = vpop.f32.mrf.mxu0
        %v773 = vadd.f32 %v533, %v772
        %v774 = vpop.f32.mrf.mxu0
        %v775 = vadd.f32 %v529, %v774
        %v776 = vpop.f32.mrf.mxu0
        %v777 = vadd.f32 %v533, %v776
        %778 = vmatprep.mubr.bf16.mxu0 %v439
        %779 = vmatmul.mubr.bf16.gmra.mxu0 %v438
        %v780 = vpop.f32.mrf.mxu0
        %v781 = vadd.f32 %v529, %v780
        %v782 = vpop.f32.mrf.mxu0
        %v783 = vadd.f32 %v533, %v782
        %v784 = vpop.f32.mrf.mxu0
        %v785 = vadd.f32 %v529, %v784
        %v786 = vpop.f32.mrf.mxu0
        %v787 = vadd.f32 %v533, %v786
        %788 = vmatprep.mubr.bf16.mxu0 %v441
        %789 = vmatmul.mubr.bf16.gmra.mxu0 %v440
        %v790 = vpop.f32.mrf.mxu0
        %v791 = vadd.f32 %v529, %v790
        %v792 = vpop.f32.mrf.mxu0
        %v793 = vadd.f32 %v533, %v792
        %v794 = vpop.f32.mrf.mxu0
        %v795 = vadd.f32 %v529, %v794
        %v796 = vpop.f32.mrf.mxu0
        %v797 = vadd.f32 %v533, %v796
        %798 = vmatprep.mubr.bf16.mxu0 %v443
        %799 = vmatmul.mubr.bf16.gmra.mxu0 %v442
        %v800 = vpop.f32.mrf.mxu0
        %v801 = vadd.f32 %v529, %v800
        %v802 = vpop.f32.mrf.mxu0
        %v803 = vadd.f32 %v533, %v802
        %v804 = vpop.f32.mrf.mxu0
        %v805 = vadd.f32 %v529, %v804
        %v806 = vpop.f32.mrf.mxu0
        %v807 = vadd.f32 %v533, %v806
        %808 = vmatprep.mubr.bf16.mxu0 %v445
        %809 = vmatmul.mubr.bf16.gmra.mxu0 %v444
        %v810 = vpop.f32.mrf.mxu0
        %v811 = vadd.f32 %v529, %v810
        %v812 = vpop.f32.mrf.mxu0
        %v813 = vadd.f32 %v533, %v812
        %v814 = vpop.f32.mrf.mxu0
        %v815 = vadd.f32 %v529, %v814
        %v816 = vpop.f32.mrf.mxu0
        %v817 = vadd.f32 %v533, %v816
        %818 = vmatprep.mubr.bf16.mxu0 %v447
        %819 = vmatmul.mubr.bf16.gmra.mxu0 %v446
        %v820 = vpop.f32.mrf.mxu0
        %v821 = vadd.f32 %v529, %v820
        %v822 = vpop.f32.mrf.mxu0
        %v823 = vadd.f32 %v533, %v822
        %v824 = vpop.f32.mrf.mxu0
        %v825 = vadd.f32 %v529, %v824
        %v826 = vpop.f32.mrf.mxu0
        %v827 = vadd.f32 %v533, %v826
        %828 = vmatprep.mubr.bf16.mxu0 %v449
        %829 = vmatmul.mubr.bf16.gmra.mxu0 %v448
        %v830 = vpop.f32.mrf.mxu0
        %v831 = vadd.f32 %v529, %v830
        %v832 = vpop.f32.mrf.mxu0
        %v833 = vadd.f32 %v533, %v832
        %v834 = vpop.f32.mrf.mxu0
        %v835 = vadd.f32 %v529, %v834
        %v836 = vpop.f32.mrf.mxu0
        %v837 = vadd.f32 %v533, %v836
        %838 = vmatprep.mubr.bf16.mxu0 %v451
        %839 = vmatmul.mubr.bf16.gmra.mxu0 %v450
        %v840 = vpop.f32.mrf.mxu0
        %v841 = vadd.f32 %v529, %v840
        %v842 = vpop.f32.mrf.mxu0
        %v843 = vadd.f32 %v533, %v842
        %v844 = vpop.f32.mrf.mxu0
        %v845 = vadd.f32 %v529, %v844
        %v846 = vpop.f32.mrf.mxu0
        %v847 = vadd.f32 %v533, %v846
        %848 = vmatprep.mubr.bf16.mxu0 %v453
        %849 = vmatmul.mubr.bf16.gmra.mxu0 %v452
        %v850 = vpop.f32.mrf.mxu0
        %v851 = vadd.f32 %v529, %v850
        %v852 = vpop.f32.mrf.mxu0
        %v853 = vadd.f32 %v533, %v852
        %v854 = vpop.f32.mrf.mxu0
        %v855 = vadd.f32 %v529, %v854
        %v856 = vpop.f32.mrf.mxu0
        %v857 = vadd.f32 %v533, %v856
        %858 = vmatprep.mubr.bf16.mxu0 %v455
        %859 = vmatmul.mubr.bf16.gmra.mxu0 %v454
        %v860 = vpop.f32.mrf.mxu0
        %v861 = vadd.f32 %v529, %v860
        %v862 = vpop.f32.mrf.mxu0
        %v863 = vadd.f32 %v533, %v862
        %v864 = vpop.f32.mrf.mxu0
        %v865 = vadd.f32 %v529, %v864
        %v866 = vpop.f32.mrf.mxu0
        %v867 = vadd.f32 %v533, %v866
        %868 = vmatprep.mubr.bf16.mxu0 %v457
        %869 = vmatmul.mubr.bf16.gmra.mxu0 %v456
        %v870 = vpop.f32.mrf.mxu0
        %v871 = vadd.f32 %v529, %v870
        %v872 = vpop.f32.mrf.mxu0
        %v873 = vadd.f32 %v533, %v872
        %v874 = vpop.f32.mrf.mxu0
        %v875 = vadd.f32 %v529, %v874
        %v876 = vpop.f32.mrf.mxu0
        %v877 = vadd.f32 %v533, %v876
        %878 = vmatprep.mubr.bf16.mxu0 %v459
        %879 = vmatmul.mubr.bf16.gmra.mxu0 %v458
        %v880 = vpop.f32.mrf.mxu0
        %v881 = vadd.f32 %v529, %v880
        %v882 = vpop.f32.mrf.mxu0
        %v883 = vadd.f32 %v533, %v882
        %v884 = vpop.f32.mrf.mxu0
        %v885 = vadd.f32 %v529, %v884
        %v886 = vpop.f32.mrf.mxu0
        %v887 = vadd.f32 %v533, %v886
        %888 = vmatprep.mubr.bf16.mxu0 %v461
        %889 = vmatmul.mubr.bf16.gmra.mxu0 %v460
        %v890 = vpop.f32.mrf.mxu0
        %v891 = vadd.f32 %v529, %v890
        %v892 = vpop.f32.mrf.mxu0
        %v893 = vadd.f32 %v533, %v892
        %v894 = vpop.f32.mrf.mxu0
        %v895 = vadd.f32 %v529, %v894
        %v896 = vpop.f32.mrf.mxu0
        %v897 = vadd.f32 %v533, %v896
        %898 = vmatprep.mubr.bf16.mxu0 %v463
        %899 = vmatmul.mubr.bf16.gmra.mxu0 %v462
        %v900 = vpop.f32.mrf.mxu0
        %v901 = vadd.f32 %v529, %v900
        %v902 = vpop.f32.mrf.mxu0
        %v903 = vadd.f32 %v533, %v902
        %v904 = vpop.f32.mrf.mxu0
        %v905 = vadd.f32 %v529, %v904
        %v906 = vpop.f32.mrf.mxu0
        %v907 = vadd.f32 %v533, %v906
        %908 = vmatprep.mubr.bf16.mxu0 %v465
        %909 = vmatmul.mubr.bf16.gmra.mxu0 %v464
        %v910 = vpop.f32.mrf.mxu0
        %v911 = vadd.f32 %v529, %v910
        %v912 = vpop.f32.mrf.mxu0
        %v913 = vadd.f32 %v533, %v912
        %v914 = vpop.f32.mrf.mxu0
        %v915 = vadd.f32 %v529, %v914
        %v916 = vpop.f32.mrf.mxu0
        %v917 = vadd.f32 %v533, %v916
        %918 = vmatprep.mubr.bf16.mxu0 %v467
        %919 = vmatmul.mubr.bf16.gmra.mxu0 %v466
        %v920 = vpop.f32.mrf.mxu0
        %v921 = vadd.f32 %v529, %v920
        %v922 = vpop.f32.mrf.mxu0
        %v923 = vadd.f32 %v533, %v922
        %v924 = vpop.f32.mrf.mxu0
        %v925 = vadd.f32 %v529, %v924
        %v926 = vpop.f32.mrf.mxu0
        %v927 = vadd.f32 %v533, %v926
        %928 = vmatprep.mubr.bf16.mxu0 %v469
        %929 = vmatmul.mubr.bf16.gmra.mxu0 %v468
        %v930 = vpop.f32.mrf.mxu0
        %v931 = vadd.f32 %v529, %v930
        %v932 = vpop.f32.mrf.mxu0
        %v933 = vadd.f32 %v533, %v932
        %v934 = vpop.f32.mrf.mxu0
        %v935 = vadd.f32 %v529, %v934
        %v936 = vpop.f32.mrf.mxu0
        %v937 = vadd.f32 %v533, %v936
        %938 = vmatprep.mubr.bf16.mxu0 %v471
        %939 = vmatmul.mubr.bf16.gmra.mxu0 %v470
        %v940 = vpop.f32.mrf.mxu0
        %v941 = vadd.f32 %v529, %v940
        %v942 = vpop.f32.mrf.mxu0
        %v943 = vadd.f32 %v533, %v942
        %v944 = vpop.f32.mrf.mxu0
        %v945 = vadd.f32 %v529, %v944
        %v946 = vpop.f32.mrf.mxu0
        %v947 = vadd.f32 %v533, %v946
        %948 = vmatprep.mubr.bf16.mxu0 %v473
        %949 = vmatmul.mubr.bf16.gmra.mxu0 %v472
        %v950 = vpop.f32.mrf.mxu0
        %v951 = vadd.f32 %v529, %v950
        %v952 = vpop.f32.mrf.mxu0
        %v953 = vadd.f32 %v533, %v952
        %v954 = vpop.f32.mrf.mxu0
        %v955 = vadd.f32 %v529, %v954
        %v956 = vpop.f32.mrf.mxu0
        %v957 = vadd.f32 %v533, %v956
        %958 = vmatprep.mubr.bf16.mxu0 %v475
        %959 = vmatmul.mubr.bf16.gmra.mxu0 %v474
        %v960 = vpop.f32.mrf.mxu0
        %v961 = vadd.f32 %v529, %v960
        %v962 = vpop.f32.mrf.mxu0
        %v963 = vadd.f32 %v533, %v962
        %v964 = vpop.f32.mrf.mxu0
        %v965 = vadd.f32 %v529, %v964
        %v966 = vpop.f32.mrf.mxu0
        %v967 = vadd.f32 %v533, %v966
        %968 = vmatprep.mubr.bf16.mxu0 %v477
        %969 = vmatmul.mubr.bf16.gmra.mxu0 %v476
        %v970 = vpop.f32.mrf.mxu0
        %v971 = vadd.f32 %v529, %v970
        %v972 = vpop.f32.mrf.mxu0
        %v973 = vadd.f32 %v533, %v972
        %v974 = vpop.f32.mrf.mxu0
        %v975 = vadd.f32 %v529, %v974
        %v976 = vpop.f32.mrf.mxu0
        %v977 = vadd.f32 %v533, %v976
        %978 = vmatprep.mubr.bf16.mxu0 %v479
        %979 = vmatmul.mubr.bf16.gmra.mxu0 %v478
        %v980 = vpop.f32.mrf.mxu0
        %v981 = vadd.f32 %v529, %v980
        %v982 = vpop.f32.mrf.mxu0
        %v983 = vadd.f32 %v533, %v982
        %v984 = vpop.f32.mrf.mxu0
        %v985 = vadd.f32 %v529, %v984
        %v986 = vpop.f32.mrf.mxu0
        %v987 = vadd.f32 %v533, %v986
        %988 = vmatprep.mubr.bf16.mxu0 %v481
        %989 = vmatmul.mubr.bf16.gmra.mxu0 %v480
        %v990 = vpop.f32.mrf.mxu0
        %v991 = vadd.f32 %v529, %v990
        %v992 = vpop.f32.mrf.mxu0
        %v993 = vadd.f32 %v533, %v992
        %v994 = vpop.f32.mrf.mxu0
        %v995 = vadd.f32 %v529, %v994
        %v996 = vpop.f32.mrf.mxu0
        %v997 = vadd.f32 %v533, %v996
        %998 = vmatprep.mubr.bf16.mxu0 %v483
        %999 = vmatmul.mubr.bf16.gmra.mxu0 %v482
        %v1000 = vpop.f32.mrf.mxu0
        %v1001 = vadd.f32 %v529, %v1000
        %v1002 = vpop.f32.mrf.mxu0
        %v1003 = vadd.f32 %v533, %v1002
        %v1004 = vpop.f32.mrf.mxu0
        %v1005 = vadd.f32 %v529, %v1004
        %v1006 = vpop.f32.mrf.mxu0
        %v1007 = vadd.f32 %v533, %v1006
        %1008 = vmatprep.mubr.bf16.mxu0 %v485
        %1009 = vmatmul.mubr.bf16.gmra.mxu0 %v484
        %v1010 = vpop.f32.mrf.mxu0
        %v1011 = vadd.f32 %v529, %v1010
        %v1012 = vpop.f32.mrf.mxu0
        %v1013 = vadd.f32 %v533, %v1012
        %v1014 = vpop.f32.mrf.mxu0
        %v1015 = vadd.f32 %v529, %v1014
        %v1016 = vpop.f32.mrf.mxu0
        %v1017 = vadd.f32 %v533, %v1016
        %1018 = vmatprep.mubr.bf16.mxu0 %v487
        %1019 = vmatmul.mubr.bf16.gmra.mxu0 %v486
        %v1020 = vpop.f32.mrf.mxu0
        %v1021 = vadd.f32 %v529, %v1020
        %v1022 = vpop.f32.mrf.mxu0
        %v1023 = vadd.f32 %v533, %v1022
        %v1024 = vpop.f32.mrf.mxu0
        %v1025 = vadd.f32 %v529, %v1024
        %v1026 = vpop.f32.mrf.mxu0
        %v1027 = vadd.f32 %v533, %v1026
        %1028 = vmatprep.mubr.bf16.mxu0 %v489
        %1029 = vmatmul.mubr.bf16.gmra.mxu0 %v488
        %v1030 = vpop.f32.mrf.mxu0
        %v1031 = vadd.f32 %v529, %v1030
        %v1032 = vpop.f32.mrf.mxu0
        %v1033 = vadd.f32 %v533, %v1032
        %v1034 = vpop.f32.mrf.mxu0
        %v1035 = vadd.f32 %v529, %v1034
        %v1036 = vpop.f32.mrf.mxu0
        %v1037 = vadd.f32 %v533, %v1036
        %1038 = vmatprep.mubr.bf16.mxu0 %v491
        %1039 = vmatmul.mubr.bf16.gmra.mxu0 %v490
        %v1040 = vpop.f32.mrf.mxu0
        %v1041 = vadd.f32 %v529, %v1040
        %v1042 = vpop.f32.mrf.mxu0
        %v1043 = vadd.f32 %v533, %v1042
        %v1044 = vpop.f32.mrf.mxu0
        %v1045 = vadd.f32 %v529, %v1044
        %v1046 = vpop.f32.mrf.mxu0
        %v1047 = vadd.f32 %v533, %v1046
        %1048 = vdwg.mxu0
        %v1049 = vmax.f32 %v731, 0.0
        %v1050 = vmax.f32 %v733, 0.0
        %v1051 = vmax.f32 %v735, 0.0
        %v1052 = vmax.f32 %v737, 0.0
        %v1053 = vmax.f32 %v741, 0.0
        %v1054 = vmax.f32 %v743, 0.0
        %v1055 = vmax.f32 %v745, 0.0
        %v1056 = vmax.f32 %v747, 0.0
        %v1057 = vmax.f32 %v751, 0.0
        %v1058 = vmax.f32 %v753, 0.0
        %v1059 = vmax.f32 %v755, 0.0
        %v1060 = vmax.f32 %v757, 0.0
        %v1061 = vmax.f32 %v761, 0.0
        %v1062 = vmax.f32 %v763, 0.0
        %v1063 = vmax.f32 %v765, 0.0
        %v1064 = vmax.f32 %v767, 0.0
        %v1065 = vmax.f32 %v771, 0.0
        %v1066 = vmax.f32 %v773, 0.0
        %v1067 = vmax.f32 %v775, 0.0
        %v1068 = vmax.f32 %v777, 0.0
        %v1069 = vmax.f32 %v781, 0.0
        %v1070 = vmax.f32 %v783, 0.0
        %v1071 = vmax.f32 %v785, 0.0
        %v1072 = vmax.f32 %v787, 0.0
        %v1073 = vmax.f32 %v791, 0.0
        %v1074 = vmax.f32 %v793, 0.0
        %v1075 = vmax.f32 %v795, 0.0
        %v1076 = vmax.f32 %v797, 0.0
        %v1077 = vmax.f32 %v801, 0.0
        %v1078 = vmax.f32 %v803, 0.0
        %v1079 = vmax.f32 %v805, 0.0
        %v1080 = vmax.f32 %v807, 0.0
        %v1081 = vmax.f32 %v811, 0.0
        %v1082 = vmax.f32 %v813, 0.0
        %v1083 = vmax.f32 %v815, 0.0
        %v1084 = vmax.f32 %v817, 0.0
        %v1085 = vmax.f32 %v821, 0.0
        %v1086 = vmax.f32 %v823, 0.0
        %v1087 = vmax.f32 %v825, 0.0
        %v1088 = vmax.f32 %v827, 0.0
        %v1089 = vmax.f32 %v831, 0.0
        %v1090 = vmax.f32 %v833, 0.0
        %v1091 = vmax.f32 %v835, 0.0
        %v1092 = vmax.f32 %v837, 0.0
        %v1093 = vmax.f32 %v841, 0.0
        %v1094 = vmax.f32 %v843, 0.0
        %v1095 = vmax.f32 %v845, 0.0
        %v1096 = vmax.f32 %v847, 0.0
        %v1097 = vmax.f32 %v851, 0.0
        %v1098 = vmax.f32 %v853, 0.0
        %v1099 = vmax.f32 %v855, 0.0
        %v1100 = vmax.f32 %v857, 0.0
        %v1101 = vmax.f32 %v861, 0.0
        %v1102 = vmax.f32 %v863, 0.0
        %v1103 = vmax.f32 %v865, 0.0
        %v1104 = vmax.f32 %v867, 0.0
        %v1105 = vmax.f32 %v871, 0.0
        %v1106 = vmax.f32 %v873, 0.0
        %v1107 = vmax.f32 %v875, 0.0
        %v1108 = vmax.f32 %v877, 0.0
        %v1109 = vmax.f32 %v881, 0.0
        %v1110 = vmax.f32 %v883, 0.0
        %v1111 = vmax.f32 %v885, 0.0
        %v1112 = vmax.f32 %v887, 0.0
        %v1113 = vmax.f32 %v891, 0.0
        %v1114 = vmax.f32 %v893, 0.0
        %v1115 = vmax.f32 %v895, 0.0
        %v1116 = vmax.f32 %v897, 0.0
        %v1117 = vmax.f32 %v901, 0.0
        %v1118 = vmax.f32 %v903, 0.0
        %v1119 = vmax.f32 %v905, 0.0
        %v1120 = vmax.f32 %v907, 0.0
        %v1121 = vmax.f32 %v911, 0.0
        %v1122 = vmax.f32 %v913, 0.0
        %v1123 = vmax.f32 %v915, 0.0
        %v1124 = vmax.f32 %v917, 0.0
        %v1125 = vmax.f32 %v921, 0.0
        %v1126 = vmax.f32 %v923, 0.0
        %v1127 = vmax.f32 %v925, 0.0
        %v1128 = vmax.f32 %v927, 0.0
        %v1129 = vmax.f32 %v931, 0.0
        %v1130 = vmax.f32 %v933, 0.0
        %v1131 = vmax.f32 %v935, 0.0
        %v1132 = vmax.f32 %v937, 0.0
        %v1133 = vmax.f32 %v941, 0.0
        %v1134 = vmax.f32 %v943, 0.0
        %v1135 = vmax.f32 %v945, 0.0
        %v1136 = vmax.f32 %v947, 0.0
        %v1137 = vmax.f32 %v951, 0.0
        %v1138 = vmax.f32 %v953, 0.0
        %v1139 = vmax.f32 %v955, 0.0
        %v1140 = vmax.f32 %v957, 0.0
        %v1141 = vmax.f32 %v961, 0.0
        %v1142 = vmax.f32 %v963, 0.0
        %v1143 = vmax.f32 %v965, 0.0
        %v1144 = vmax.f32 %v967, 0.0
        %v1145 = vmax.f32 %v971, 0.0
        %v1146 = vmax.f32 %v973, 0.0
        %v1147 = vmax.f32 %v975, 0.0
        %v1148 = vmax.f32 %v977, 0.0
        %v1149 = vmax.f32 %v981, 0.0
        %v1150 = vmax.f32 %v983, 0.0
        %v1151 = vmax.f32 %v985, 0.0
        %v1152 = vmax.f32 %v987, 0.0
        %v1153 = vmax.f32 %v991, 0.0
        %v1154 = vmax.f32 %v993, 0.0
        %v1155 = vmax.f32 %v995, 0.0
        %v1156 = vmax.f32 %v997, 0.0
        %v1157 = vmax.f32 %v1001, 0.0
        %v1158 = vmax.f32 %v1003, 0.0
        %v1159 = vmax.f32 %v1005, 0.0
        %v1160 = vmax.f32 %v1007, 0.0
        %v1161 = vmax.f32 %v1011, 0.0
        %v1162 = vmax.f32 %v1013, 0.0
        %v1163 = vmax.f32 %v1015, 0.0
        %v1164 = vmax.f32 %v1017, 0.0
        %v1165 = vmax.f32 %v1021, 0.0
        %v1166 = vmax.f32 %v1023, 0.0
        %v1167 = vmax.f32 %v1025, 0.0
        %v1168 = vmax.f32 %v1027, 0.0
        %v1169 = vmax.f32 %v1031, 0.0
        %v1170 = vmax.f32 %v1033, 0.0
        %v1171 = vmax.f32 %v1035, 0.0
        %v1172 = vmax.f32 %v1037, 0.0
        %v1173 = vmax.f32 %v1041, 0.0
        %v1174 = vmax.f32 %v1043, 0.0
        %v1175 = vmax.f32 %v1045, 0.0
        %v1176 = vmax.f32 %v1047, 0.0
        %v1177 = vpack.c.bf16 %v1051, %v1049
        %v1178 = vpack.c.bf16 %v1052, %v1050
        %v1179 = vpack.c.bf16 %v1055, %v1053
        %v1180 = vpack.c.bf16 %v1056, %v1054
        %v1181 = vpack.c.bf16 %v1059, %v1057
        %v1182 = vpack.c.bf16 %v1060, %v1058
        %v1183 = vpack.c.bf16 %v1063, %v1061
        %v1184 = vpack.c.bf16 %v1064, %v1062
        %v1185 = vpack.c.bf16 %v1067, %v1065
        %v1186 = vpack.c.bf16 %v1068, %v1066
        %v1187 = vpack.c.bf16 %v1071, %v1069
        %v1188 = vpack.c.bf16 %v1072, %v1070
        %v1189 = vpack.c.bf16 %v1075, %v1073
        %v1190 = vpack.c.bf16 %v1076, %v1074
        %v1191 = vpack.c.bf16 %v1079, %v1077
        %v1192 = vpack.c.bf16 %v1080, %v1078
        %v1193 = vpack.c.bf16 %v1083, %v1081
        %v1194 = vpack.c.bf16 %v1084, %v1082
        %v1195 = vpack.c.bf16 %v1087, %v1085
        %v1196 = vpack.c.bf16 %v1088, %v1086
        %v1197 = vpack.c.bf16 %v1091, %v1089
        %v1198 = vpack.c.bf16 %v1092, %v1090
        %v1199 = vpack.c.bf16 %v1095, %v1093
        %v1200 = vpack.c.bf16 %v1096, %v1094
        %v1201 = vpack.c.bf16 %v1099, %v1097
        %v1202 = vpack.c.bf16 %v1100, %v1098
        %v1203 = vpack.c.bf16 %v1103, %v1101
        %v1204 = vpack.c.bf16 %v1104, %v1102
        %v1205 = vpack.c.bf16 %v1107, %v1105
        %v1206 = vpack.c.bf16 %v1108, %v1106
        %v1207 = vpack.c.bf16 %v1111, %v1109
        %v1208 = vpack.c.bf16 %v1112, %v1110
        %v1209 = vpack.c.bf16 %v1115, %v1113
        %v1210 = vpack.c.bf16 %v1116, %v1114
        %v1211 = vpack.c.bf16 %v1119, %v1117
        %v1212 = vpack.c.bf16 %v1120, %v1118
        %v1213 = vpack.c.bf16 %v1123, %v1121
        %v1214 = vpack.c.bf16 %v1124, %v1122
        %v1215 = vpack.c.bf16 %v1127, %v1125
        %v1216 = vpack.c.bf16 %v1128, %v1126
        %v1217 = vpack.c.bf16 %v1131, %v1129
        %v1218 = vpack.c.bf16 %v1132, %v1130
        %v1219 = vpack.c.bf16 %v1135, %v1133
        %v1220 = vpack.c.bf16 %v1136, %v1134
        %v1221 = vpack.c.bf16 %v1139, %v1137
        %v1222 = vpack.c.bf16 %v1140, %v1138
        %v1223 = vpack.c.bf16 %v1143, %v1141
        %v1224 = vpack.c.bf16 %v1144, %v1142
        %v1225 = vpack.c.bf16 %v1147, %v1145
        %v1226 = vpack.c.bf16 %v1148, %v1146
        %v1227 = vpack.c.bf16 %v1151, %v1149
        %v1228 = vpack.c.bf16 %v1152, %v1150
        %v1229 = vpack.c.bf16 %v1155, %v1153
        %v1230 = vpack.c.bf16 %v1156, %v1154
        %v1231 = vpack.c.bf16 %v1159, %v1157
        %v1232 = vpack.c.bf16 %v1160, %v1158
        %v1233 = vpack.c.bf16 %v1163, %v1161
        %v1234 = vpack.c.bf16 %v1164, %v1162
        %v1235 = vpack.c.bf16 %v1167, %v1165
        %v1236 = vpack.c.bf16 %v1168, %v1166
        %v1237 = vpack.c.bf16 %v1171, %v1169
        %v1238 = vpack.c.bf16 %v1172, %v1170
        %v1239 = vpack.c.bf16 %v1175, %v1173
        %v1240 = vpack.c.bf16 %v1176, %v1174
        %v1241 = vld [vmem:[#allocation8] sm:$0xff]
        %v1242 = vld [vmem:[#allocation8 + $0x8] sm:$0xff]
        %v1243 = vld [vmem:[#allocation8 + $0x10] sm:$0xff]
        %v1244 = vld [vmem:[#allocation8 + $0x18] sm:$0xff]
        %v1245 = vld [vmem:[#allocation8 + $0x20] sm:$0xff]
        %v1246 = vld [vmem:[#allocation8 + $0x28] sm:$0xff]
        %v1247 = vld [vmem:[#allocation8 + $0x30] sm:$0xff]
        %v1248 = vld [vmem:[#allocation8 + $0x38] sm:$0xff]
        %v1249 = vld [vmem:[#allocation8 + $0x40] sm:$0xff]
        %v1250 = vld [vmem:[#allocation8 + $0x48] sm:$0xff]
        %v1251 = vld [vmem:[#allocation8 + $0x50] sm:$0xff]
        %v1252 = vld [vmem:[#allocation8 + $0x58] sm:$0xff]
        %v1253 = vld [vmem:[#allocation8 + $0x60] sm:$0xff]
        %v1254 = vld [vmem:[#allocation8 + $0x68] sm:$0xff]
        %v1255 = vld [vmem:[#allocation8 + $0x70] sm:$0xff]
        %v1256 = vld [vmem:[#allocation8 + $0x78] sm:$0xff]
        %v1257 = vld [vmem:[#allocation8 + $0x80] sm:$0xff]
        %v1258 = vld [vmem:[#allocation8 + $0x88] sm:$0xff]
        %v1259 = vld [vmem:[#allocation8 + $0x90] sm:$0xff]
        %v1260 = vld [vmem:[#allocation8 + $0x98] sm:$0xff]
        %v1261 = vld [vmem:[#allocation8 + $0xa0] sm:$0xff]
        %v1262 = vld [vmem:[#allocation8 + $0xa8] sm:$0xff]
        %v1263 = vld [vmem:[#allocation8 + $0xb0] sm:$0xff]
        %v1264 = vld [vmem:[#allocation8 + $0xb8] sm:$0xff]
        %v1265 = vld [vmem:[#allocation8 + $0xc0] sm:$0xff]
        %v1266 = vld [vmem:[#allocation8 + $0xc8] sm:$0xff]
        %v1267 = vld [vmem:[#allocation8 + $0xd0] sm:$0xff]
        %v1268 = vld [vmem:[#allocation8 + $0xd8] sm:$0xff]
        %v1269 = vld [vmem:[#allocation8 + $0xe0] sm:$0xff]
        %v1270 = vld [vmem:[#allocation8 + $0xe8] sm:$0xff]
        %v1271 = vld [vmem:[#allocation8 + $0xf0] sm:$0xff]
        %v1272 = vld [vmem:[#allocation8 + $0xf8] sm:$0xff]
        %v1273 = vld [vmem:[#allocation10] sm:$0x3]
        %v1275 = vlaneseq
        %v1276 = vshrl.u32 %v1275, 7
        %v1277 = vsub.s32 0, %v1276
        %v1278 = vrot.slane %v1273, %v1277
        %v1279 = vlaneseq
        %v1280 = vshrl.u32 %v1279, 7
        %v1281 = vsub.s32 1, %v1280
        %v1282 = vrot.slane %v1273, %v1281
        %v1317 = vunpack.c.l.b16 %v1241
        %v1318 = vunpack.c.h.b16 %v1241
        %v1319 = vunpack.c.l.b16 %v1242
        %v1320 = vunpack.c.h.b16 %v1242
        %v1321 = vunpack.c.l.b16 %v1243
        %v1322 = vunpack.c.h.b16 %v1243
        %v1323 = vunpack.c.l.b16 %v1244
        %v1324 = vunpack.c.h.b16 %v1244
        %v1325 = vunpack.c.l.b16 %v1245
        %v1326 = vunpack.c.h.b16 %v1245
        %v1327 = vunpack.c.l.b16 %v1246
        %v1328 = vunpack.c.h.b16 %v1246
        %v1329 = vunpack.c.l.b16 %v1247
        %v1330 = vunpack.c.h.b16 %v1247
        %v1331 = vunpack.c.l.b16 %v1248
        %v1332 = vunpack.c.h.b16 %v1248
        %v1333 = vunpack.c.l.b16 %v1249
        %v1334 = vunpack.c.h.b16 %v1249
        %v1335 = vunpack.c.l.b16 %v1250
        %v1336 = vunpack.c.h.b16 %v1250
        %v1337 = vunpack.c.l.b16 %v1251
        %v1338 = vunpack.c.h.b16 %v1251
        %v1339 = vunpack.c.l.b16 %v1252
        %v1340 = vunpack.c.h.b16 %v1252
        %v1341 = vunpack.c.l.b16 %v1253
        %v1342 = vunpack.c.h.b16 %v1253
        %v1343 = vunpack.c.l.b16 %v1254
        %v1344 = vunpack.c.h.b16 %v1254
        %v1345 = vunpack.c.l.b16 %v1255
        %v1346 = vunpack.c.h.b16 %v1255
        %v1347 = vunpack.c.l.b16 %v1256
        %v1348 = vunpack.c.h.b16 %v1256
        %v1349 = vunpack.c.l.b16 %v1257
        %v1350 = vunpack.c.h.b16 %v1257
        %v1351 = vunpack.c.l.b16 %v1258
        %v1352 = vunpack.c.h.b16 %v1258
        %v1353 = vunpack.c.l.b16 %v1259
        %v1354 = vunpack.c.h.b16 %v1259
        %v1355 = vunpack.c.l.b16 %v1260
        %v1356 = vunpack.c.h.b16 %v1260
        %v1357 = vunpack.c.l.b16 %v1261
        %v1358 = vunpack.c.h.b16 %v1261
        %v1359 = vunpack.c.l.b16 %v1262
        %v1360 = vunpack.c.h.b16 %v1262
        %v1361 = vunpack.c.l.b16 %v1263
        %v1362 = vunpack.c.h.b16 %v1263
        %v1363 = vunpack.c.l.b16 %v1264
        %v1364 = vunpack.c.h.b16 %v1264
        %v1365 = vunpack.c.l.b16 %v1265
        %v1366 = vunpack.c.h.b16 %v1265
        %v1367 = vunpack.c.l.b16 %v1266
        %v1368 = vunpack.c.h.b16 %v1266
        %v1369 = vunpack.c.l.b16 %v1267
        %v1370 = vunpack.c.h.b16 %v1267
        %v1371 = vunpack.c.l.b16 %v1268
        %v1372 = vunpack.c.h.b16 %v1268
        %v1373 = vunpack.c.l.b16 %v1269
        %v1374 = vunpack.c.h.b16 %v1269
        %v1375 = vunpack.c.l.b16 %v1270
        %v1376 = vunpack.c.h.b16 %v1270
        %v1377 = vunpack.c.l.b16 %v1271
        %v1378 = vunpack.c.h.b16 %v1271
        %v1379 = vunpack.c.l.b16 %v1272
        %v1380 = vunpack.c.h.b16 %v1272
        %v1381 = vpack.c.b16 %v1319, %v1317
        %v1382 = vpack.c.b16 %v1320, %v1318
        %v1383 = vpack.c.b16 %v1323, %v1321
        %v1384 = vpack.c.b16 %v1324, %v1322
        %v1385 = vpack.c.b16 %v1327, %v1325
        %v1386 = vpack.c.b16 %v1328, %v1326
        %v1387 = vpack.c.b16 %v1331, %v1329
        %v1388 = vpack.c.b16 %v1332, %v1330
        %v1389 = vpack.c.b16 %v1335, %v1333
        %v1390 = vpack.c.b16 %v1336, %v1334
        %v1391 = vpack.c.b16 %v1339, %v1337
        %v1392 = vpack.c.b16 %v1340, %v1338
        %v1393 = vpack.c.b16 %v1343, %v1341
        %v1394 = vpack.c.b16 %v1344, %v1342
        %v1395 = vpack.c.b16 %v1347, %v1345
        %v1396 = vpack.c.b16 %v1348, %v1346
        %v1397 = vpack.c.b16 %v1351, %v1349
        %v1398 = vpack.c.b16 %v1352, %v1350
        %v1399 = vpack.c.b16 %v1355, %v1353
        %v1400 = vpack.c.b16 %v1356, %v1354
        %v1401 = vpack.c.b16 %v1359, %v1357
        %v1402 = vpack.c.b16 %v1360, %v1358
        %v1403 = vpack.c.b16 %v1363, %v1361
        %v1404 = vpack.c.b16 %v1364, %v1362
        %v1405 = vpack.c.b16 %v1367, %v1365
        %v1406 = vpack.c.b16 %v1368, %v1366
        %v1407 = vpack.c.b16 %v1371, %v1369
        %v1408 = vpack.c.b16 %v1372, %v1370
        %v1409 = vpack.c.b16 %v1375, %v1373
        %v1410 = vpack.c.b16 %v1376, %v1374
        %v1411 = vpack.c.b16 %v1379, %v1377
        %v1412 = vpack.c.b16 %v1380, %v1378
        %1445 = vmatprep.subr.bf16.mxu0 %v1396
        %1446 = vmatpush1.bf16.msra.mxu0 %v1395
        %1447 = vmatprep.subr.bf16.mxu0 %v1394
        %1448 = vmatpush1.bf16.msra.mxu0 %v1393
        %1449 = vmatprep.subr.bf16.mxu0 %v1392
        %1450 = vmatpush1.bf16.msra.mxu0 %v1391
        %1451 = vmatprep.subr.bf16.mxu0 %v1390
        %1452 = vmatpush1.bf16.msra.mxu0 %v1389
        %1453 = vmatprep.subr.bf16.mxu0 %v1388
        %1454 = vmatpush1.bf16.msra.mxu0 %v1387
        %1455 = vmatprep.subr.bf16.mxu0 %v1386
        %1456 = vmatpush1.bf16.msra.mxu0 %v1385
        %1457 = vmatprep.subr.bf16.mxu0 %v1384
        %1458 = vmatpush1.bf16.msra.mxu0 %v1383
        %1459 = vmatprep.subr.bf16.mxu0 %v1382
        %1460 = vmatpush1.bf16.msra.mxu0 %v1381
        %1461 = vmatprep.subr.bf16.mxu0 %v1412
        %1462 = vmatpush2.bf16.msra.mxu0 %v1411
        %1463 = vmatprep.subr.bf16.mxu0 %v1410
        %1464 = vmatpush2.bf16.msra.mxu0 %v1409
        %1465 = vmatprep.subr.bf16.mxu0 %v1408
        %1466 = vmatpush2.bf16.msra.mxu0 %v1407
        %1467 = vmatprep.subr.bf16.mxu0 %v1406
        %1468 = vmatpush2.bf16.msra.mxu0 %v1405
        %1469 = vmatprep.subr.bf16.mxu0 %v1404
        %1470 = vmatpush2.bf16.msra.mxu0 %v1403
        %1471 = vmatprep.subr.bf16.mxu0 %v1402
        %1472 = vmatpush2.bf16.msra.mxu0 %v1401
        %1473 = vmatprep.subr.bf16.mxu0 %v1400
        %1474 = vmatpush2.bf16.msra.mxu0 %v1399
        %1475 = vmatprep.subr.bf16.mxu0 %v1398
        %1476 = vmatpush2.bf16.msra.mxu0 %v1397
        %1477 = vmatprep.mubr.bf16.mxu0 %v1178
        %1478 = vmatmul.mubr.bf16.gmra.mxu0 %v1177
        %v1479 = vpop.f32.mrf.mxu0
        %v1480 = vadd.f32 %v1278, %v1479
        %v1481 = vpop.f32.mrf.mxu0
        %v1482 = vadd.f32 %v1282, %v1481
        %v1483 = vpop.f32.mrf.mxu0
        %v1484 = vadd.f32 %v1278, %v1483
        %v1485 = vpop.f32.mrf.mxu0
        %v1486 = vadd.f32 %v1282, %v1485
        %1487 = vmatprep.mubr.bf16.mxu0 %v1180
        %1488 = vmatmul.mubr.bf16.gmra.mxu0 %v1179
        %v1489 = vpop.f32.mrf.mxu0
        %v1490 = vadd.f32 %v1278, %v1489
        %v1491 = vpop.f32.mrf.mxu0
        %v1492 = vadd.f32 %v1282, %v1491
        %v1493 = vpop.f32.mrf.mxu0
        %v1494 = vadd.f32 %v1278, %v1493
        %v1495 = vpop.f32.mrf.mxu0
        %v1496 = vadd.f32 %v1282, %v1495
        %1497 = vmatprep.mubr.bf16.mxu0 %v1182
        %1498 = vmatmul.mubr.bf16.gmra.mxu0 %v1181
        %v1499 = vpop.f32.mrf.mxu0
        %v1500 = vadd.f32 %v1278, %v1499
        %v1501 = vpop.f32.mrf.mxu0
        %v1502 = vadd.f32 %v1282, %v1501
        %v1503 = vpop.f32.mrf.mxu0
        %v1504 = vadd.f32 %v1278, %v1503
        %v1505 = vpop.f32.mrf.mxu0
        %v1506 = vadd.f32 %v1282, %v1505
        %1507 = vmatprep.mubr.bf16.mxu0 %v1184
        %1508 = vmatmul.mubr.bf16.gmra.mxu0 %v1183
        %v1509 = vpop.f32.mrf.mxu0
        %v1510 = vadd.f32 %v1278, %v1509
        %v1511 = vpop.f32.mrf.mxu0
        %v1512 = vadd.f32 %v1282, %v1511
        %v1513 = vpop.f32.mrf.mxu0
        %v1514 = vadd.f32 %v1278, %v1513
        %v1515 = vpop.f32.mrf.mxu0
        %v1516 = vadd.f32 %v1282, %v1515
        %1517 = vmatprep.mubr.bf16.mxu0 %v1186
        %1518 = vmatmul.mubr.bf16.gmra.mxu0 %v1185
        %v1519 = vpop.f32.mrf.mxu0
        %v1520 = vadd.f32 %v1278, %v1519
        %v1521 = vpop.f32.mrf.mxu0
        %v1522 = vadd.f32 %v1282, %v1521
        %v1523 = vpop.f32.mrf.mxu0
        %v1524 = vadd.f32 %v1278, %v1523
        %v1525 = vpop.f32.mrf.mxu0
        %v1526 = vadd.f32 %v1282, %v1525
        %1527 = vmatprep.mubr.bf16.mxu0 %v1188
        %1528 = vmatmul.mubr.bf16.gmra.mxu0 %v1187
        %v1529 = vpop.f32.mrf.mxu0
        %v1530 = vadd.f32 %v1278, %v1529
        %v1531 = vpop.f32.mrf.mxu0
        %v1532 = vadd.f32 %v1282, %v1531
        %v1533 = vpop.f32.mrf.mxu0
        %v1534 = vadd.f32 %v1278, %v1533
        %v1535 = vpop.f32.mrf.mxu0
        %v1536 = vadd.f32 %v1282, %v1535
        %1537 = vmatprep.mubr.bf16.mxu0 %v1190
        %1538 = vmatmul.mubr.bf16.gmra.mxu0 %v1189
        %v1539 = vpop.f32.mrf.mxu0
        %v1540 = vadd.f32 %v1278, %v1539
        %v1541 = vpop.f32.mrf.mxu0
        %v1542 = vadd.f32 %v1282, %v1541
        %v1543 = vpop.f32.mrf.mxu0
        %v1544 = vadd.f32 %v1278, %v1543
        %v1545 = vpop.f32.mrf.mxu0
        %v1546 = vadd.f32 %v1282, %v1545
        %1547 = vmatprep.mubr.bf16.mxu0 %v1192
        %1548 = vmatmul.mubr.bf16.gmra.mxu0 %v1191
        %v1549 = vpop.f32.mrf.mxu0
        %v1550 = vadd.f32 %v1278, %v1549
        %v1551 = vpop.f32.mrf.mxu0
        %v1552 = vadd.f32 %v1282, %v1551
        %v1553 = vpop.f32.mrf.mxu0
        %v1554 = vadd.f32 %v1278, %v1553
        %v1555 = vpop.f32.mrf.mxu0
        %v1556 = vadd.f32 %v1282, %v1555
        %1557 = vmatprep.mubr.bf16.mxu0 %v1194
        %1558 = vmatmul.mubr.bf16.gmra.mxu0 %v1193
        %v1559 = vpop.f32.mrf.mxu0
        %v1560 = vadd.f32 %v1278, %v1559
        %v1561 = vpop.f32.mrf.mxu0
        %v1562 = vadd.f32 %v1282, %v1561
        %v1563 = vpop.f32.mrf.mxu0
        %v1564 = vadd.f32 %v1278, %v1563
        %v1565 = vpop.f32.mrf.mxu0
        %v1566 = vadd.f32 %v1282, %v1565
        %1567 = vmatprep.mubr.bf16.mxu0 %v1196
        %1568 = vmatmul.mubr.bf16.gmra.mxu0 %v1195
        %v1569 = vpop.f32.mrf.mxu0
        %v1570 = vadd.f32 %v1278, %v1569
        %v1571 = vpop.f32.mrf.mxu0
        %v1572 = vadd.f32 %v1282, %v1571
        %v1573 = vpop.f32.mrf.mxu0
        %v1574 = vadd.f32 %v1278, %v1573
        %v1575 = vpop.f32.mrf.mxu0
        %v1576 = vadd.f32 %v1282, %v1575
        %1577 = vmatprep.mubr.bf16.mxu0 %v1198
        %1578 = vmatmul.mubr.bf16.gmra.mxu0 %v1197
        %v1579 = vpop.f32.mrf.mxu0
        %v1580 = vadd.f32 %v1278, %v1579
        %v1581 = vpop.f32.mrf.mxu0
        %v1582 = vadd.f32 %v1282, %v1581
        %v1583 = vpop.f32.mrf.mxu0
        %v1584 = vadd.f32 %v1278, %v1583
        %v1585 = vpop.f32.mrf.mxu0
        %v1586 = vadd.f32 %v1282, %v1585
        %1587 = vmatprep.mubr.bf16.mxu0 %v1200
        %1588 = vmatmul.mubr.bf16.gmra.mxu0 %v1199
        %v1589 = vpop.f32.mrf.mxu0
        %v1590 = vadd.f32 %v1278, %v1589
        %v1591 = vpop.f32.mrf.mxu0
        %v1592 = vadd.f32 %v1282, %v1591
        %v1593 = vpop.f32.mrf.mxu0
        %v1594 = vadd.f32 %v1278, %v1593
        %v1595 = vpop.f32.mrf.mxu0
        %v1596 = vadd.f32 %v1282, %v1595
        %1597 = vmatprep.mubr.bf16.mxu0 %v1202
        %1598 = vmatmul.mubr.bf16.gmra.mxu0 %v1201
        %v1599 = vpop.f32.mrf.mxu0
        %v1600 = vadd.f32 %v1278, %v1599
        %v1601 = vpop.f32.mrf.mxu0
        %v1602 = vadd.f32 %v1282, %v1601
        %v1603 = vpop.f32.mrf.mxu0
        %v1604 = vadd.f32 %v1278, %v1603
        %v1605 = vpop.f32.mrf.mxu0
        %v1606 = vadd.f32 %v1282, %v1605
        %1607 = vmatprep.mubr.bf16.mxu0 %v1204
        %1608 = vmatmul.mubr.bf16.gmra.mxu0 %v1203
        %v1609 = vpop.f32.mrf.mxu0
        %v1610 = vadd.f32 %v1278, %v1609
        %v1611 = vpop.f32.mrf.mxu0
        %v1612 = vadd.f32 %v1282, %v1611
        %v1613 = vpop.f32.mrf.mxu0
        %v1614 = vadd.f32 %v1278, %v1613
        %v1615 = vpop.f32.mrf.mxu0
        %v1616 = vadd.f32 %v1282, %v1615
        %1617 = vmatprep.mubr.bf16.mxu0 %v1206
        %1618 = vmatmul.mubr.bf16.gmra.mxu0 %v1205
        %v1619 = vpop.f32.mrf.mxu0
        %v1620 = vadd.f32 %v1278, %v1619
        %v1621 = vpop.f32.mrf.mxu0
        %v1622 = vadd.f32 %v1282, %v1621
        %v1623 = vpop.f32.mrf.mxu0
        %v1624 = vadd.f32 %v1278, %v1623
        %v1625 = vpop.f32.mrf.mxu0
        %v1626 = vadd.f32 %v1282, %v1625
        %1627 = vmatprep.mubr.bf16.mxu0 %v1208
        %1628 = vmatmul.mubr.bf16.gmra.mxu0 %v1207
        %v1629 = vpop.f32.mrf.mxu0
        %v1630 = vadd.f32 %v1278, %v1629
        %v1631 = vpop.f32.mrf.mxu0
        %v1632 = vadd.f32 %v1282, %v1631
        %v1633 = vpop.f32.mrf.mxu0
        %v1634 = vadd.f32 %v1278, %v1633
        %v1635 = vpop.f32.mrf.mxu0
        %v1636 = vadd.f32 %v1282, %v1635
        %1637 = vmatprep.mubr.bf16.mxu0 %v1210
        %1638 = vmatmul.mubr.bf16.gmra.mxu0 %v1209
        %v1639 = vpop.f32.mrf.mxu0
        %v1640 = vadd.f32 %v1278, %v1639
        %v1641 = vpop.f32.mrf.mxu0
        %v1642 = vadd.f32 %v1282, %v1641
        %v1643 = vpop.f32.mrf.mxu0
        %v1644 = vadd.f32 %v1278, %v1643
        %v1645 = vpop.f32.mrf.mxu0
        %v1646 = vadd.f32 %v1282, %v1645
        %1647 = vmatprep.mubr.bf16.mxu0 %v1212
        %1648 = vmatmul.mubr.bf16.gmra.mxu0 %v1211
        %v1649 = vpop.f32.mrf.mxu0
        %v1650 = vadd.f32 %v1278, %v1649
        %v1651 = vpop.f32.mrf.mxu0
        %v1652 = vadd.f32 %v1282, %v1651
        %v1653 = vpop.f32.mrf.mxu0
        %v1654 = vadd.f32 %v1278, %v1653
        %v1655 = vpop.f32.mrf.mxu0
        %v1656 = vadd.f32 %v1282, %v1655
        %1657 = vmatprep.mubr.bf16.mxu0 %v1214
        %1658 = vmatmul.mubr.bf16.gmra.mxu0 %v1213
        %v1659 = vpop.f32.mrf.mxu0
        %v1660 = vadd.f32 %v1278, %v1659
        %v1661 = vpop.f32.mrf.mxu0
        %v1662 = vadd.f32 %v1282, %v1661
        %v1663 = vpop.f32.mrf.mxu0
        %v1664 = vadd.f32 %v1278, %v1663
        %v1665 = vpop.f32.mrf.mxu0
        %v1666 = vadd.f32 %v1282, %v1665
        %1667 = vmatprep.mubr.bf16.mxu0 %v1216
        %1668 = vmatmul.mubr.bf16.gmra.mxu0 %v1215
        %v1669 = vpop.f32.mrf.mxu0
        %v1670 = vadd.f32 %v1278, %v1669
        %v1671 = vpop.f32.mrf.mxu0
        %v1672 = vadd.f32 %v1282, %v1671
        %v1673 = vpop.f32.mrf.mxu0
        %v1674 = vadd.f32 %v1278, %v1673
        %v1675 = vpop.f32.mrf.mxu0
        %v1676 = vadd.f32 %v1282, %v1675
        %1677 = vmatprep.mubr.bf16.mxu0 %v1218
        %1678 = vmatmul.mubr.bf16.gmra.mxu0 %v1217
        %v1679 = vpop.f32.mrf.mxu0
        %v1680 = vadd.f32 %v1278, %v1679
        %v1681 = vpop.f32.mrf.mxu0
        %v1682 = vadd.f32 %v1282, %v1681
        %v1683 = vpop.f32.mrf.mxu0
        %v1684 = vadd.f32 %v1278, %v1683
        %v1685 = vpop.f32.mrf.mxu0
        %v1686 = vadd.f32 %v1282, %v1685
        %1687 = vmatprep.mubr.bf16.mxu0 %v1220
        %1688 = vmatmul.mubr.bf16.gmra.mxu0 %v1219
        %v1689 = vpop.f32.mrf.mxu0
        %v1690 = vadd.f32 %v1278, %v1689
        %v1691 = vpop.f32.mrf.mxu0
        %v1692 = vadd.f32 %v1282, %v1691
        %v1693 = vpop.f32.mrf.mxu0
        %v1694 = vadd.f32 %v1278, %v1693
        %v1695 = vpop.f32.mrf.mxu0
        %v1696 = vadd.f32 %v1282, %v1695
        %1697 = vmatprep.mubr.bf16.mxu0 %v1222
        %1698 = vmatmul.mubr.bf16.gmra.mxu0 %v1221
        %v1699 = vpop.f32.mrf.mxu0
        %v1700 = vadd.f32 %v1278, %v1699
        %v1701 = vpop.f32.mrf.mxu0
        %v1702 = vadd.f32 %v1282, %v1701
        %v1703 = vpop.f32.mrf.mxu0
        %v1704 = vadd.f32 %v1278, %v1703
        %v1705 = vpop.f32.mrf.mxu0
        %v1706 = vadd.f32 %v1282, %v1705
        %1707 = vmatprep.mubr.bf16.mxu0 %v1224
        %1708 = vmatmul.mubr.bf16.gmra.mxu0 %v1223
        %v1709 = vpop.f32.mrf.mxu0
        %v1710 = vadd.f32 %v1278, %v1709
        %v1711 = vpop.f32.mrf.mxu0
        %v1712 = vadd.f32 %v1282, %v1711
        %v1713 = vpop.f32.mrf.mxu0
        %v1714 = vadd.f32 %v1278, %v1713
        %v1715 = vpop.f32.mrf.mxu0
        %v1716 = vadd.f32 %v1282, %v1715
        %1717 = vmatprep.mubr.bf16.mxu0 %v1226
        %1718 = vmatmul.mubr.bf16.gmra.mxu0 %v1225
        %v1719 = vpop.f32.mrf.mxu0
        %v1720 = vadd.f32 %v1278, %v1719
        %v1721 = vpop.f32.mrf.mxu0
        %v1722 = vadd.f32 %v1282, %v1721
        %v1723 = vpop.f32.mrf.mxu0
        %v1724 = vadd.f32 %v1278, %v1723
        %v1725 = vpop.f32.mrf.mxu0
        %v1726 = vadd.f32 %v1282, %v1725
        %1727 = vmatprep.mubr.bf16.mxu0 %v1228
        %1728 = vmatmul.mubr.bf16.gmra.mxu0 %v1227
        %v1729 = vpop.f32.mrf.mxu0
        %v1730 = vadd.f32 %v1278, %v1729
        %v1731 = vpop.f32.mrf.mxu0
        %v1732 = vadd.f32 %v1282, %v1731
        %v1733 = vpop.f32.mrf.mxu0
        %v1734 = vadd.f32 %v1278, %v1733
        %v1735 = vpop.f32.mrf.mxu0
        %v1736 = vadd.f32 %v1282, %v1735
        %1737 = vmatprep.mubr.bf16.mxu0 %v1230
        %1738 = vmatmul.mubr.bf16.gmra.mxu0 %v1229
        %v1739 = vpop.f32.mrf.mxu0
        %v1740 = vadd.f32 %v1278, %v1739
        %v1741 = vpop.f32.mrf.mxu0
        %v1742 = vadd.f32 %v1282, %v1741
        %v1743 = vpop.f32.mrf.mxu0
        %v1744 = vadd.f32 %v1278, %v1743
        %v1745 = vpop.f32.mrf.mxu0
        %v1746 = vadd.f32 %v1282, %v1745
        %1747 = vmatprep.mubr.bf16.mxu0 %v1232
        %1748 = vmatmul.mubr.bf16.gmra.mxu0 %v1231
        %v1749 = vpop.f32.mrf.mxu0
        %v1750 = vadd.f32 %v1278, %v1749
        %v1751 = vpop.f32.mrf.mxu0
        %v1752 = vadd.f32 %v1282, %v1751
        %v1753 = vpop.f32.mrf.mxu0
        %v1754 = vadd.f32 %v1278, %v1753
        %v1755 = vpop.f32.mrf.mxu0
        %v1756 = vadd.f32 %v1282, %v1755
        %1757 = vmatprep.mubr.bf16.mxu0 %v1234
        %1758 = vmatmul.mubr.bf16.gmra.mxu0 %v1233
        %v1759 = vpop.f32.mrf.mxu0
        %v1760 = vadd.f32 %v1278, %v1759
        %v1761 = vpop.f32.mrf.mxu0
        %v1762 = vadd.f32 %v1282, %v1761
        %v1763 = vpop.f32.mrf.mxu0
        %v1764 = vadd.f32 %v1278, %v1763
        %v1765 = vpop.f32.mrf.mxu0
        %v1766 = vadd.f32 %v1282, %v1765
        %1767 = vmatprep.mubr.bf16.mxu0 %v1236
        %1768 = vmatmul.mubr.bf16.gmra.mxu0 %v1235
        %v1769 = vpop.f32.mrf.mxu0
        %v1770 = vadd.f32 %v1278, %v1769
        %v1771 = vpop.f32.mrf.mxu0
        %v1772 = vadd.f32 %v1282, %v1771
        %v1773 = vpop.f32.mrf.mxu0
        %v1774 = vadd.f32 %v1278, %v1773
        %v1775 = vpop.f32.mrf.mxu0
        %v1776 = vadd.f32 %v1282, %v1775
        %1777 = vmatprep.mubr.bf16.mxu0 %v1238
        %1778 = vmatmul.mubr.bf16.gmra.mxu0 %v1237
        %v1779 = vpop.f32.mrf.mxu0
        %v1780 = vadd.f32 %v1278, %v1779
        %v1781 = vpop.f32.mrf.mxu0
        %v1782 = vadd.f32 %v1282, %v1781
        %v1783 = vpop.f32.mrf.mxu0
        %v1784 = vadd.f32 %v1278, %v1783
        %v1785 = vpop.f32.mrf.mxu0
        %v1786 = vadd.f32 %v1282, %v1785
        %1787 = vmatprep.mubr.bf16.mxu0 %v1240
        %1788 = vmatmul.mubr.bf16.gmra.mxu0 %v1239
        %v1789 = vpop.f32.mrf.mxu0
        %v1790 = vadd.f32 %v1278, %v1789
        %v1791 = vpop.f32.mrf.mxu0
        %v1792 = vadd.f32 %v1282, %v1791
        %v1793 = vpop.f32.mrf.mxu0
        %v1794 = vadd.f32 %v1278, %v1793
        %v1795 = vpop.f32.mrf.mxu0
        %v1796 = vadd.f32 %v1282, %v1795
        %1797 = vdwg.mxu0
        %1798 = vst [vmem:[%s297] sm:$0xff] %v1480
        %1799 = vst [vmem:[%s297 + $0x8] sm:$0xff] %v1482
        %1800 = vst [vmem:[%s297 + $0x10] sm:$0xff] %v1484
        %1801 = vst [vmem:[%s297 + $0x18] sm:$0xff] %v1486
        %1802 = vst [vmem:[%s297 + $0x20] sm:$0xff] %v1490
        %1803 = vst [vmem:[%s297 + $0x28] sm:$0xff] %v1492
        %1804 = vst [vmem:[%s297 + $0x30] sm:$0xff] %v1494
        %1805 = vst [vmem:[%s297 + $0x38] sm:$0xff] %v1496
        %1806 = vst [vmem:[%s297 + $0x40] sm:$0xff] %v1500
        %1807 = vst [vmem:[%s297 + $0x48] sm:$0xff] %v1502
        %1808 = vst [vmem:[%s297 + $0x50] sm:$0xff] %v1504
        %1809 = vst [vmem:[%s297 + $0x58] sm:$0xff] %v1506
        %1810 = vst [vmem:[%s297 + $0x60] sm:$0xff] %v1510
        %1811 = vst [vmem:[%s297 + $0x68] sm:$0xff] %v1512
        %1812 = vst [vmem:[%s297 + $0x70] sm:$0xff] %v1514
        %1813 = vst [vmem:[%s297 + $0x78] sm:$0xff] %v1516
        %1814 = vst [vmem:[%s297 + $0x80] sm:$0xff] %v1520
        %1815 = vst [vmem:[%s297 + $0x88] sm:$0xff] %v1522
        %1816 = vst [vmem:[%s297 + $0x90] sm:$0xff] %v1524
        %1817 = vst [vmem:[%s297 + $0x98] sm:$0xff] %v1526
        %1818 = vst [vmem:[%s297 + $0xa0] sm:$0xff] %v1530
        %1819 = vst [vmem:[%s297 + $0xa8] sm:$0xff] %v1532
        %1820 = vst [vmem:[%s297 + $0xb0] sm:$0xff] %v1534
        %1821 = vst [vmem:[%s297 + $0xb8] sm:$0xff] %v1536
        %1822 = vst [vmem:[%s297 + $0xc0] sm:$0xff] %v1540
        %1823 = vst [vmem:[%s297 + $0xc8] sm:$0xff] %v1542
        %1824 = vst [vmem:[%s297 + $0xd0] sm:$0xff] %v1544
        %1825 = vst [vmem:[%s297 + $0xd8] sm:$0xff] %v1546
        %1826 = vst [vmem:[%s297 + $0xe0] sm:$0xff] %v1550
        %1827 = vst [vmem:[%s297 + $0xe8] sm:$0xff] %v1552
        %1828 = vst [vmem:[%s297 + $0xf0] sm:$0xff] %v1554
        %1829 = vst [vmem:[%s297 + $0xf8] sm:$0xff] %v1556
        %1830 = vst [vmem:[%s297 + $0x100] sm:$0xff] %v1560
        %1831 = vst [vmem:[%s297 + $0x108] sm:$0xff] %v1562
        %1832 = vst [vmem:[%s297 + $0x110] sm:$0xff] %v1564
        %1833 = vst [vmem:[%s297 + $0x118] sm:$0xff] %v1566
        %1834 = vst [vmem:[%s297 + $0x120] sm:$0xff] %v1570
        %1835 = vst [vmem:[%s297 + $0x128] sm:$0xff] %v1572
        %1836 = vst [vmem:[%s297 + $0x130] sm:$0xff] %v1574
        %1837 = vst [vmem:[%s297 + $0x138] sm:$0xff] %v1576
        %1838 = vst [vmem:[%s297 + $0x140] sm:$0xff] %v1580
        %1839 = vst [vmem:[%s297 + $0x148] sm:$0xff] %v1582
        %1840 = vst [vmem:[%s297 + $0x150] sm:$0xff] %v1584
        %1841 = vst [vmem:[%s297 + $0x158] sm:$0xff] %v1586
        %1842 = vst [vmem:[%s297 + $0x160] sm:$0xff] %v1590
        %1843 = vst [vmem:[%s297 + $0x168] sm:$0xff] %v1592
        %1844 = vst [vmem:[%s297 + $0x170] sm:$0xff] %v1594
        %1845 = vst [vmem:[%s297 + $0x178] sm:$0xff] %v1596
        %1846 = vst [vmem:[%s297 + $0x180] sm:$0xff] %v1600
        %1847 = vst [vmem:[%s297 + $0x188] sm:$0xff] %v1602
        %1848 = vst [vmem:[%s297 + $0x190] sm:$0xff] %v1604
        %1849 = vst [vmem:[%s297 + $0x198] sm:$0xff] %v1606
        %1850 = vst [vmem:[%s297 + $0x1a0] sm:$0xff] %v1610
        %1851 = vst [vmem:[%s297 + $0x1a8] sm:$0xff] %v1612
        %1852 = vst [vmem:[%s297 + $0x1b0] sm:$0xff] %v1614
        %1853 = vst [vmem:[%s297 + $0x1b8] sm:$0xff] %v1616
        %1854 = vst [vmem:[%s297 + $0x1c0] sm:$0xff] %v1620
        %1855 = vst [vmem:[%s297 + $0x1c8] sm:$0xff] %v1622
        %1856 = vst [vmem:[%s297 + $0x1d0] sm:$0xff] %v1624
        %1857 = vst [vmem:[%s297 + $0x1d8] sm:$0xff] %v1626
        %1858 = vst [vmem:[%s297 + $0x1e0] sm:$0xff] %v1630
        %1859 = vst [vmem:[%s297 + $0x1e8] sm:$0xff] %v1632
        %1860 = vst [vmem:[%s297 + $0x1f0] sm:$0xff] %v1634
        %1861 = vst [vmem:[%s297 + $0x1f8] sm:$0xff] %v1636
        %1862 = vst [vmem:[%s297 + $0x200] sm:$0xff] %v1640
        %1863 = vst [vmem:[%s297 + $0x208] sm:$0xff] %v1642
        %1864 = vst [vmem:[%s297 + $0x210] sm:$0xff] %v1644
        %1865 = vst [vmem:[%s297 + $0x218] sm:$0xff] %v1646
        %1866 = vst [vmem:[%s297 + $0x220] sm:$0xff] %v1650
        %1867 = vst [vmem:[%s297 + $0x228] sm:$0xff] %v1652
        %1868 = vst [vmem:[%s297 + $0x230] sm:$0xff] %v1654
        %1869 = vst [vmem:[%s297 + $0x238] sm:$0xff] %v1656
        %1870 = vst [vmem:[%s297 + $0x240] sm:$0xff] %v1660
        %1871 = vst [vmem:[%s297 + $0x248] sm:$0xff] %v1662
        %1872 = vst [vmem:[%s297 + $0x250] sm:$0xff] %v1664
        %1873 = vst [vmem:[%s297 + $0x258] sm:$0xff] %v1666
        %1874 = vst [vmem:[%s297 + $0x260] sm:$0xff] %v1670
        %1875 = vst [vmem:[%s297 + $0x268] sm:$0xff] %v1672
        %1876 = vst [vmem:[%s297 + $0x270] sm:$0xff] %v1674
        %1877 = vst [vmem:[%s297 + $0x278] sm:$0xff] %v1676
        %1878 = vst [vmem:[%s297 + $0x280] sm:$0xff] %v1680
        %1879 = vst [vmem:[%s297 + $0x288] sm:$0xff] %v1682
        %1880 = vst [vmem:[%s297 + $0x290] sm:$0xff] %v1684
        %1881 = vst [vmem:[%s297 + $0x298] sm:$0xff] %v1686
        %1882 = vst [vmem:[%s297 + $0x2a0] sm:$0xff] %v1690
        %1883 = vst [vmem:[%s297 + $0x2a8] sm:$0xff] %v1692
        %1884 = vst [vmem:[%s297 + $0x2b0] sm:$0xff] %v1694
        %1885 = vst [vmem:[%s297 + $0x2b8] sm:$0xff] %v1696
        %1886 = vst [vmem:[%s297 + $0x2c0] sm:$0xff] %v1700
        %1887 = vst [vmem:[%s297 + $0x2c8] sm:$0xff] %v1702
        %1888 = vst [vmem:[%s297 + $0x2d0] sm:$0xff] %v1704
        %1889 = vst [vmem:[%s297 + $0x2d8] sm:$0xff] %v1706
        %1890 = vst [vmem:[%s297 + $0x2e0] sm:$0xff] %v1710
        %1891 = vst [vmem:[%s297 + $0x2e8] sm:$0xff] %v1712
        %1892 = vst [vmem:[%s297 + $0x2f0] sm:$0xff] %v1714
        %1893 = vst [vmem:[%s297 + $0x2f8] sm:$0xff] %v1716
        %1894 = vst [vmem:[%s297 + $0x300] sm:$0xff] %v1720
        %1895 = vst [vmem:[%s297 + $0x308] sm:$0xff] %v1722
        %1896 = vst [vmem:[%s297 + $0x310] sm:$0xff] %v1724
        %1897 = vst [vmem:[%s297 + $0x318] sm:$0xff] %v1726
        %1898 = vst [vmem:[%s297 + $0x320] sm:$0xff] %v1730
        %1899 = vst [vmem:[%s297 + $0x328] sm:$0xff] %v1732
        %1900 = vst [vmem:[%s297 + $0x330] sm:$0xff] %v1734
        %1901 = vst [vmem:[%s297 + $0x338] sm:$0xff] %v1736
        %1902 = vst [vmem:[%s297 + $0x340] sm:$0xff] %v1740
        %1903 = vst [vmem:[%s297 + $0x348] sm:$0xff] %v1742
        %1904 = vst [vmem:[%s297 + $0x350] sm:$0xff] %v1744
        %1905 = vst [vmem:[%s297 + $0x358] sm:$0xff] %v1746
        %1906 = vst [vmem:[%s297 + $0x360] sm:$0xff] %v1750
        %1907 = vst [vmem:[%s297 + $0x368] sm:$0xff] %v1752
        %1908 = vst [vmem:[%s297 + $0x370] sm:$0xff] %v1754
        %1909 = vst [vmem:[%s297 + $0x378] sm:$0xff] %v1756
        %1910 = vst [vmem:[%s297 + $0x380] sm:$0xff] %v1760
        %1911 = vst [vmem:[%s297 + $0x388] sm:$0xff] %v1762
        %1912 = vst [vmem:[%s297 + $0x390] sm:$0xff] %v1764
        %1913 = vst [vmem:[%s297 + $0x398] sm:$0xff] %v1766
        %1914 = vst [vmem:[%s297 + $0x3a0] sm:$0xff] %v1770
        %1915 = vst [vmem:[%s297 + $0x3a8] sm:$0xff] %v1772
        %1916 = vst [vmem:[%s297 + $0x3b0] sm:$0xff] %v1774
        %1917 = vst [vmem:[%s297 + $0x3b8] sm:$0xff] %v1776
        %1918 = vst [vmem:[%s297 + $0x3c0] sm:$0xff] %v1780
        %1919 = vst [vmem:[%s297 + $0x3c8] sm:$0xff] %v1782
        %1920 = vst [vmem:[%s297 + $0x3d0] sm:$0xff] %v1784
        %1921 = vst [vmem:[%s297 + $0x3d8] sm:$0xff] %v1786
        %1922 = vst [vmem:[%s297 + $0x3e0] sm:$0xff] %v1790
        %1923 = vst [vmem:[%s297 + $0x3e8] sm:$0xff] %v1792
        %1924 = vst [vmem:[%s297 + $0x3f0] sm:$0xff] %v1794
        %1925 = vst [vmem:[%s297 + $0x3f8] sm:$0xff] %v1796
        %s1926 = sand.u32 %s142, 1
        %s1927 = scalar_lea.sflag [#allocation4], %s1926
        %s1928 = sand.u32 %s142, 1
        %s1929 = smul.addr %s1928, 1024
        %s1930 = scalar_lea.vmem [#allocation11], %s1929
        // Predicated region
        $region61: #{tpu_custom_call.1} parent=39 // pred_check
          %p1931 = pneg %p152
        $region62: #{tpu_custom_call.1} parent=39 // pred_check_branch
          %1933 = sbr.rel (%p1931) target = $region64
        $region63: #{tpu_custom_call.1} parent=39 // pred_region
          %s1934 = smul.u32 64, %s24
          %s1936 = ssub.s32 16384, 16384
          %1937 = vsyncadd %s1927, %s1936
          %s1938 = smul.addr %s1934, 2
          %s1939 = smul.addr %s1938, 128
          %s1940 = scalar_lea.hbm %s5, %s1939
          %s1941 = sshll.u32 %s1930, 4
          %s1942 = int_to_ptr.vmem [resolvable:$true] %s1941
          %1947 = dma.vmem_to_hbm [thread:$0]  %s1942, 16384, %s1940, %s1927, 256, 256, 16
        $region64: #{tpu_custom_call.1} parent=39 // pred_fallthru
          _
      $region40: #{tpu_custom_call.1} parent=5 // pred_fallthru
        _
      %p1948 = scmp.le.s32.totalorder 2, %s19
      // Predicated region
      $region65: #{tpu_custom_call.1} parent=5 // pred_check
        %p1949 = pneg %p1948
      $region66: #{tpu_custom_call.1} parent=5 // pred_check_branch
        %1951 = sbr.rel (%p1949) target = $region68
      $region67: #{tpu_custom_call.1} parent=5 // pred_region
        %s1952 = ssub.s32 %s19, 2
        // Predicated region
        $region69: #{tpu_custom_call.1} parent=67 // pred_check
          %p1953 = pneg %p158
        $region70: #{tpu_custom_call.1} parent=67 // pred_check_branch
          %1955 = sbr.rel (%p1953) target = $region72
        $region71: #{tpu_custom_call.1} parent=67 // pred_region
          %s1956 = sand.u32 %s143, 1
          %s1957 = scalar_lea.sflag [#allocation4], %s1956
          %s1958 = sand.u32 %s143, 1
          %s1959 = smul.addr %s1958, 1024
          %s1960 = scalar_lea.vmem [#allocation11], %s1959
          %1961 = dma.done %s1957, 16384
        $region72: #{tpu_custom_call.1} parent=67 // pred_fallthru
          _
      $region68: #{tpu_custom_call.1} parent=5 // pred_fallthru
        _
    $region6: #{tpu_custom_call.1} parent=1 // loop_footer
      %s23 = sadd.s32 1, %s19
    $region7: #{tpu_custom_call.1} parent=1 // loop_footer_branch
      %18 = sbr.rel target = $region3
    $region8: #{tpu_custom_call.1} parent=1 // loop_exit
      _
    %1962 = vsyncpa [#allocation3], 1
    %s1963 = scalar_lea.sflag [#allocation3], 1
    %1964 = vsyncpa %s1963, 1
    %1965 = vsyncpa [#allocation6], 1
    %1966 = vsyncpa [#allocation9], 1
    %1967 = vsyncpa [#allocation4], 1
    %s1968 = scalar_lea.sflag [#allocation4], 1
    %1969 = vsyncpa %s1968, 1

</llo_original>
